<compile_context>
chip_gen: v6e
topology: v6e:2x2x1
jax: 0.10.0
libtpu: 0.0.40
codegen_flags: <defaults>
</compile_context>

<pallas_src>
import functools

import jax
import jax.numpy as jnp
from jax.experimental import pallas as pl
from jax.experimental.pallas import tpu as pltpu


def _round_up(x, m):
    return -(-x // m) * m


# ---------------------------------------------------------------------------
# Fused kernel: halo pad + all convs + max-over-time + bias/ReLU + FC + LogSoftmax.
# ---------------------------------------------------------------------------
def conv_model_kernel(x_ref, *refs, filtsz, seq_len, max_pad, nc, time_tile):
    # x_ref  : (TB, T, D) bf16 embeddings (unpadded)
    # refs   : w_0..w_{F-1} (fsz_f*D, NFC_pad) bf16  channel-packed conv weights
    #          cbias        (1, NFC_pad)       f32   channel-packed conv biases
    #          fcw          (NFC_pad, NC_pad)  f32
    #          fcb          (1, NC_pad)        f32
    #          o_ref        (TB, NC_pad)       f32
    #          xp_ref       (TB, T+2*max_pad, D) bf16 VMEM scratch (halo pad)
    nf = len(filtsz)
    w_refs = refs[:nf]
    cb_ref = refs[nf]
    fcw_ref = refs[nf + 1]
    fcb_ref = refs[nf + 2]
    o_ref = refs[nf + 3]
    xp_ref = refs[nf + 4]

    tb, _, d = x_ref.shape
    nfc_pad = cb_ref.shape[-1]
    nc_pad = o_ref.shape[-1]

    # Stage the unpadded tile into the halo-padded scratch; zero only the halo
    # rows (cheap) instead of a host-side jnp.pad + extra HBM round trip.
    if max_pad > 0:
        xp_ref[:, :max_pad, :] = jnp.zeros((tb, max_pad, d), xp_ref.dtype)
        xp_ref[:, max_pad + seq_len:, :] = jnp.zeros((tb, max_pad, d), xp_ref.dtype)
    xp_ref[:, max_pad:max_pad + seq_len, :] = x_ref[...]

    # Channel-packed max-over-time features.  Filter f's weight lives in its own
    # column slice of NFC_pad and is zero elsewhere, so its conv output (and its
    # time max) is exactly 0 in every other filter's columns: summing the
    # per-filter maxima reconstructs the concatenation with no lane shuffles.
    packed = jnp.zeros((tb, nfc_pad), jnp.float32)
    for fsz, w_ref in zip(filtsz, w_refs):
        pad_f = fsz // 2
        start = max_pad - pad_f                    # this filter's window offset
        t_out = seq_len + 2 * pad_f - fsz + 1      # PyTorch Conv1d output length
        w = w_ref[...]                             # (fsz*D, NFC_pad) bf16

        fmax = None
        for t0 in range(0, t_out, time_tile):      # time-blocked running max
            tt = min(time_tile, t_out - t0)
            # im2col for this time tile: lhs[(i, t), k*D + d] = xpad[i, start+t0+t+k, d]
            cols = [xp_ref[:, start + t0 + k:start + t0 + k + tt, :]
                    for k in range(fsz)]
            lhs = jnp.concatenate(cols, axis=-1).reshape(tb * tt, fsz * d)
            conv = jnp.dot(lhs, w, preferred_element_type=jnp.float32)
            blk = jnp.max(conv.reshape(tb, tt, nfc_pad), axis=1)
            fmax = blk if fmax is None else jnp.maximum(fmax, blk)
        packed = packed + fmax

    # Bias + ReLU AFTER the time max (exact: bias is time-invariant, ReLU monotone).
    feat = jnp.maximum(packed + cb_ref[...], 0.0)

    # One FC dot over the whole packed feature axis (K = nf*C, padded), kept f32.
    logits = jnp.dot(feat, fcw_ref[...],
                     preferred_element_type=jnp.float32) + fcb_ref[...]

    # LogSoftmax(dim=1) over the real classes only (pad lanes masked out).
    lane = jax.lax.broadcasted_iota(jnp.int32, (tb, nc_pad), 1)
    valid = lane < nc
    neg = jnp.float32(-1e30)
    m = jnp.max(jnp.where(valid, logits, neg), axis=-1, keepdims=True)
    z = logits - m
    e = jnp.exp(jnp.where(valid, z, neg))
    o_ref[...] = z - jnp.log(jnp.sum(e, axis=-1, keepdims=True))


def _vmem_limit(tb, t, d, max_pad, conv_ws, nfc_pad, nc_pad, time_tile):
    bf, f4 = 2, 4
    t_pad = t + 2 * max_pad
    max_fk = max(w.shape[0] for w in conv_ws)        # fsz*D of the widest filter
    est = (2 * tb * t * d * bf                       # double-buffered input tile
           + tb * t_pad * d * bf                     # halo-padded scratch
           + 2 * sum(int(w.size) for w in conv_ws) * bf   # resident conv weights
           + 2 * (nfc_pad + nc_pad) * f4             # biases
           + 2 * nfc_pad * nc_pad * f4               # fc weight
           + 2 * tb * nc_pad * f4                    # double-buffered output tile
           + tb * time_tile * max_fk * bf            # im2col LHS
           + tb * time_tile * nfc_pad * f4           # f32 conv tile
           + 4 * tb * nfc_pad * f4)                  # feature / logit temporaries
    est = 2 * est                                    # compiler-temp headroom
    return max(32 * 1024 * 1024, min(64 * 1024 * 1024, est))


def conv_model_forward(emb, conv_ws, conv_bias, fc_w, fc_b, *,
                       filtsz, seq_len, max_pad, nc, nc_pad, tb, time_tile):
    b_pad, t, d = emb.shape
    assert b_pad % tb == 0
    grid = (b_pad // tb,)
    nfc_pad = conv_bias.shape[-1]

    kern = functools.partial(conv_model_kernel, filtsz=tuple(filtsz),
                             seq_len=seq_len, max_pad=max_pad, nc=nc,
                             time_tile=time_tile)

    in_specs = [pl.BlockSpec((tb, t, d), lambda i: (i, 0, 0))]
    in_specs += [pl.BlockSpec(w.shape, lambda i: (0, 0)) for w in conv_ws]
    in_specs += [pl.BlockSpec(conv_bias.shape, lambda i: (0, 0)),
                 pl.BlockSpec(fc_w.shape, lambda i: (0, 0)),
                 pl.BlockSpec(fc_b.shape, lambda i: (0, 0))]

    return pl.pallas_call(
        kern,
        out_shape=jax.ShapeDtypeStruct((b_pad, nc_pad), jnp.float32),
        grid=grid,
        in_specs=in_specs,
        out_specs=pl.BlockSpec((tb, nc_pad), lambda i: (i, 0)),
        scratch_shapes=[pltpu.VMEM((tb, seq_len + 2 * max_pad, d), emb.dtype)],
        compiler_params=pltpu.CompilerParams(
            dimension_semantics=("parallel",),
            vmem_limit_bytes=_vmem_limit(tb, t, d, max_pad, conv_ws,
                                         nfc_pad, nc_pad, time_tile)),
    )(emb, *conv_ws, conv_bias, fc_w, fc_b)


# ---------------------------------------------------------------------------
# Model wrapper (parameter setup + gather glue in plain JAX).
# ---------------------------------------------------------------------------
class ConvModelPallas:
    def __init__(self, key, vsz, dsz, filtsz, cmotsz, nc):
        self.filtsz = list(filtsz)
        self.cmotsz = cmotsz
        self.nc = nc
        self.dsz = dsz
        nf = len(self.filtsz)
        self.nfc = nf * cmotsz
        self.nfc_pad = _round_up(self.nfc, 128)     # lane-dense packed feature axis
        self.nc_pad = _round_up(nc, 128)            # lane-dense logits / full-lane stores

        k_lut, k_fc, *k_convs = jax.random.split(key, 2 + nf)

        # nn.Embedding(vsz + 1, dsz) -- stored bf16 (MXU-native input dtype).
        self.lut = (jax.random.normal(k_lut, (vsz + 1, dsz), jnp.float32)
                    * 0.1).astype(jnp.bfloat16)

        # Conv1d weights as (fsz, D, C) (w[k, d, c] == torch_w[c, d, k]), bf16,
        # channel-packed into (fsz*D, NFC_pad): filter f owns columns
        # [f*C, (f+1)*C), everything else is exactly zero.
        self.conv_ws_packed = []
        self._conv_ws_bf16 = []                      # unpacked copies for the reference
        self._conv_bs = []
        cbias = jnp.zeros((1, self.nfc_pad), jnp.float32)
        for f, (fsz, kc) in enumerate(zip(self.filtsz, k_convs)):
            kw, kb = jax.random.split(kc)
            bound = 1.0 / float(dsz * fsz) ** 0.5
            w = jax.random.uniform(kw, (fsz, dsz, cmotsz), jnp.float32, -bound, bound)
            b = jax.random.uniform(kb, (cmotsz,), jnp.float32, -bound, bound)
            w_bf = w.astype(jnp.bfloat16)
            wp = jnp.zeros((fsz, dsz, self.nfc_pad), jnp.bfloat16)
            wp = wp.at[:, :, f * cmotsz:(f + 1) * cmotsz].set(w_bf)
            self.conv_ws_packed.append(wp.reshape(fsz * dsz, self.nfc_pad))
            self._conv_ws_bf16.append(w_bf)
            self._conv_bs.append(b)
            cbias = cbias.at[0, f * cmotsz:(f + 1) * cmotsz].set(b)
        self.conv_bias_packed = cbias                # f32

        # Linear(nf*cmotsz, nc) -- kept f32 (tiny dot; avoids an extra bf16
        # rounding of the features), zero-padded to (NFC_pad, NC_pad).
        kw, kb = jax.random.split(k_fc)
        bound = 1.0 / float(self.nfc) ** 0.5
        fc_w = jax.random.uniform(kw, (self.nfc, self.nc), jnp.float32, -bound, bound)
        fc_b = jax.random.uniform(kb, (self.nc,), jnp.float32, -bound, bound)
        self._fc_w = fc_w
        self._fc_b = fc_b
        self.fc_w_packed = jnp.zeros((self.nfc_pad, self.nc_pad), jnp.float32
                                     ).at[:self.nfc, :self.nc].set(fc_w)
        self.fc_b_packed = jnp.zeros((1, self.nc_pad), jnp.float32
                                     ).at[0, :self.nc].set(fc_b)

    @staticmethod
    def _pick_tb(b, cap=128):
        # Multiple of 8 sublanes; capped so the per-step footprint stays well
        # inside v7x's 64 MiB VMEM (v6e/v5e get extra headroom via vmem_limit).
        b8 = max(8, _round_up(b, 8))
        return max(8, min(cap, (b8 // 2) // 8 * 8))

    def forward(self, tokens):
        b, t = tokens.shape
        max_pad = max(self.filtsz) // 2

        # Embedding gather only; time padding happens inside the kernel.
        # TODO(synk): the gather could also move in-kernel via
        #             PrefetchScalarGridSpec (tokens as scalar prefetch) to skip
        #             this (B, T, D) HBM intermediate entirely.
        emb = jnp.take(self.lut, tokens, axis=0)                     # (B, T, D) bf16

        tb = self._pick_tb(b)
        # Always >= 2 grid steps so both TensorCores get work on megacore parts.
        b_pad = max(2 * tb, _round_up(b, tb))
        if b_pad != b:
            emb = jnp.pad(emb, ((0, b_pad - b), (0, 0), (0, 0)))

        t_out_max = max(t + 2 * (f // 2) - f + 1 for f in self.filtsz)
        time_tile = max(1, min(t_out_max, max(8, 2048 // tb)))

        out = conv_model_forward(
            emb, self.conv_ws_packed, self.conv_bias_packed,
            self.fc_w_packed, self.fc_b_packed,
            filtsz=self.filtsz, seq_len=t, max_pad=max_pad,
            nc=self.nc, nc_pad=self.nc_pad, tb=tb, time_tile=time_tile)
        return out[:b, :self.nc]
        # TODO(synk): nn.Dropout(pdrop) skipped -- identity at inference time.

    # Pure-JAX f32 reference (PyTorch semantics) for correctness checking.
    def reference(self, tokens):
        emb = jnp.take(self.lut.astype(jnp.float32), tokens, axis=0)
        feats = []
        for fsz, w_bf, b in zip(self.filtsz, self._conv_ws_bf16, self._conv_bs):
            pad = fsz // 2
            xp = jnp.pad(emb, ((0, 0), (pad, pad), (0, 0)))
            t_out = xp.shape[1] - fsz + 1
            w = w_bf.astype(jnp.float32)
            acc = sum(jnp.einsum('btd,dc->btc', xp[:, k:k + t_out, :], w[k])
                      for k in range(fsz)) + b[None, None, :]
            feats.append(jnp.max(jax.nn.relu(acc), axis=1))
        m = jnp.concatenate(feats, axis=1)
        logits = m @ self._fc_w + self._fc_b
        return jax.nn.log_softmax(logits, axis=-1)


if __name__ == "__main__":
    key = jax.random.PRNGKey(0)
    k_model, k_tok = jax.random.split(key)

    # Small shapes consistent with the module: batch=16, seq=8, dsz=32,
    # vocab=50, filtsz=[3, 5], cmotsz=16, 4 labels.
    # (batch=16 -> TB=8 row tiles, 2 parallel grid steps.)
    B, T, DSZ, VSZ = 16, 8, 32, 50
    FILTSZ, CMOTSZ, NC = [3, 5], 16, 4

    model = ConvModelPallas(k_model, VSZ, DSZ, FILTSZ, CMOTSZ, NC)
    tokens = jax.random.randint(k_tok, (B, T), 0, VSZ + 1, dtype=jnp.int32)

    out = jax.block_until_ready(model.forward(tokens))
    ref = jax.block_until_ready(model.reference(tokens))

    assert out.shape == (B, NC), out.shape
    # bf16 conv inputs on the MXU vs f32 reference math -> loosened tolerance.
    assert jnp.allclose(out, ref, atol=2e-2, rtol=2e-2), (out, ref)
    print("KERNEL_OK")
</pallas_src>

<mosaic_0001>
module attributes {stable_mosaic.version = 11 : i64} {
  func.func @conv_model_kernel(%arg0: i32, %arg1: memref<8x8x32xbf16, #tpu.memory_space<vmem>>, %arg2: memref<96x128xbf16, #tpu.memory_space<vmem>>, %arg3: memref<160x128xbf16, #tpu.memory_space<vmem>>, %arg4: memref<1x128xf32, #tpu.memory_space<vmem>>, %arg5: memref<128x128xf32, #tpu.memory_space<vmem>>, %arg6: memref<1x128xf32, #tpu.memory_space<vmem>>, %arg7: memref<8x128xf32, #tpu.memory_space<vmem>>, %arg8: memref<8x12x32xbf16, #tpu.memory_space<vmem>>) attributes {dimension_semantics = [#tpu.dimension_semantics<parallel>], iteration_bounds = array<i64: 2>, scalar_prefetch = 0 : i64, scratch_operands = 1 : i64, tpu.core_type = #tpu.core_type<tc>, window_params = [{transform_indices = @transform_0, window_bounds = array<i64: 8, 8, 32>}, {pipeline_mode = #tpu.pipeline_mode<synchronous>, transform_indices = @transform_1, window_bounds = array<i64: 96, 128>}, {pipeline_mode = #tpu.pipeline_mode<synchronous>, transform_indices = @transform_2, window_bounds = array<i64: 160, 128>}, {pipeline_mode = #tpu.pipeline_mode<synchronous>, transform_indices = @transform_3, window_bounds = array<i64: 1, 128>}, {pipeline_mode = #tpu.pipeline_mode<synchronous>, transform_indices = @transform_4, window_bounds = array<i64: 128, 128>}, {pipeline_mode = #tpu.pipeline_mode<synchronous>, transform_indices = @transform_5, window_bounds = array<i64: 1, 128>}, {transform_indices = @transform_6, window_bounds = array<i64: 8, 128>}]} {
    %cst = arith.constant 0.000000e+00 : bf16
    %0 = vector.broadcast %cst : bf16 to vector<8x2x32xbf16>
    %c0 = arith.constant 0 : index
    %c0_0 = arith.constant 0 : index
    %c0_1 = arith.constant 0 : index
    %1 = vector.load %arg8[%c0, %c0_0, %c0_1] : memref<8x12x32xbf16, #tpu.memory_space<vmem>>, vector<8x2x32xbf16>
    tpu.vector_store %arg8[%c0, %c0_0, %c0_1], %0 {strides = array<i32>} : memref<8x12x32xbf16, #tpu.memory_space<vmem>>, vector<8x2x32xbf16>,
    %cst_2 = arith.constant 0.000000e+00 : bf16
    %2 = vector.broadcast %cst_2 : bf16 to vector<8x2x32xbf16>
    %c0_3 = arith.constant 0 : index
    %c10 = arith.constant 10 : index
    %c0_4 = arith.constant 0 : index
    %3 = vector.load %arg8[%c0_3, %c10, %c0_4] : memref<8x12x32xbf16, #tpu.memory_space<vmem>>, vector<8x2x32xbf16>
    tpu.vector_store %arg8[%c0_3, %c10, %c0_4], %2 {strides = array<i32>} : memref<8x12x32xbf16, #tpu.memory_space<vmem>>, vector<8x2x32xbf16>,
    %c0_5 = arith.constant 0 : index
    %c0_6 = arith.constant 0 : index
    %c0_7 = arith.constant 0 : index
    %4 = vector.load %arg1[%c0_5, %c0_6, %c0_7] : memref<8x8x32xbf16, #tpu.memory_space<vmem>>, vector<8x8x32xbf16>
    %c0_8 = arith.constant 0 : index
    %c2 = arith.constant 2 : index
    %c0_9 = arith.constant 0 : index
    %5 = vector.load %arg8[%c0_8, %c2, %c0_9] : memref<8x12x32xbf16, #tpu.memory_space<vmem>>, vector<8x8x32xbf16>
    tpu.vector_store %arg8[%c0_8, %c2, %c0_9], %4 {strides = array<i32>} : memref<8x12x32xbf16, #tpu.memory_space<vmem>>, vector<8x8x32xbf16>,
    %cst_10 = arith.constant 0.000000e+00 : f32
    %6 = vector.broadcast %cst_10 : f32 to vector<8x128xf32>
    %c0_11 = arith.constant 0 : index
    %c0_12 = arith.constant 0 : index
    %7 = vector.load %arg2[%c0_11, %c0_12] : memref<96x128xbf16, #tpu.memory_space<vmem>>, vector<96x128xbf16>
    %c0_13 = arith.constant 0 : index
    %c1 = arith.constant 1 : index
    %c0_14 = arith.constant 0 : index
    %8 = vector.load %arg8[%c0_13, %c1, %c0_14] : memref<8x12x32xbf16, #tpu.memory_space<vmem>>, vector<8x8x32xbf16>
    %c0_15 = arith.constant 0 : index
    %c2_16 = arith.constant 2 : index
    %c0_17 = arith.constant 0 : index
    %9 = vector.load %arg8[%c0_15, %c2_16, %c0_17] : memref<8x12x32xbf16, #tpu.memory_space<vmem>>, vector<8x8x32xbf16>
    %c0_18 = arith.constant 0 : index
    %c3 = arith.constant 3 : index
    %c0_19 = arith.constant 0 : index
    %10 = vector.load %arg8[%c0_18, %c3, %c0_19] : memref<8x12x32xbf16, #tpu.memory_space<vmem>>, vector<8x8x32xbf16>
    %11 = tpu.concatenate %8, %9, %10 in 2 : vector<8x8x32xbf16>, vector<8x8x32xbf16>, vector<8x8x32xbf16> -> vector<8x8x96xbf16>
    %12 = vector.shape_cast %11 : vector<8x8x96xbf16> to vector<64x96xbf16>
    %cst_20 = arith.constant dense<0.000000e+00> : vector<64x128xf32>
    %13 = tpu.matmul %12, %7, %cst_20 {dimension_numbers = #tpu.dot_dimension_numbers<[1], [0], [0], [1], [0, 0, 1, 1], [], []>} : vector<64x96xbf16>, vector<96x128xbf16>, vector<64x128xf32> -> vector<64x128xf32>
    %14 = vector.shape_cast %13 : vector<64x128xf32> to vector<8x8x128xf32>
    %cst_21 = arith.constant dense<0xFF800000> : vector<8x128xf32>
    %15 = vector.multi_reduction <maximumf>, %14, %cst_21 [1] : vector<8x8x128xf32> to vector<8x128xf32>
    %16 = arith.addf %6, %15 : vector<8x128xf32>
    %c0_22 = arith.constant 0 : index
    %c0_23 = arith.constant 0 : index
    %17 = vector.load %arg3[%c0_22, %c0_23] : memref<160x128xbf16, #tpu.memory_space<vmem>>, vector<160x128xbf16>
    %c0_24 = arith.constant 0 : index
    %c0_25 = arith.constant 0 : index
    %c0_26 = arith.constant 0 : index
    %18 = vector.load %arg8[%c0_24, %c0_25, %c0_26] : memref<8x12x32xbf16, #tpu.memory_space<vmem>>, vector<8x8x32xbf16>
    %c0_27 = arith.constant 0 : index
    %c1_28 = arith.constant 1 : index
    %c0_29 = arith.constant 0 : index
    %19 = vector.load %arg8[%c0_27, %c1_28, %c0_29] : memref<8x12x32xbf16, #tpu.memory_space<vmem>>, vector<8x8x32xbf16>
    %c0_30 = arith.constant 0 : index
    %c2_31 = arith.constant 2 : index
    %c0_32 = arith.constant 0 : index
    %20 = vector.load %arg8[%c0_30, %c2_31, %c0_32] : memref<8x12x32xbf16, #tpu.memory_space<vmem>>, vector<8x8x32xbf16>
    %c0_33 = arith.constant 0 : index
    %c3_34 = arith.constant 3 : index
    %c0_35 = arith.constant 0 : index
    %21 = vector.load %arg8[%c0_33, %c3_34, %c0_35] : memref<8x12x32xbf16, #tpu.memory_space<vmem>>, vector<8x8x32xbf16>
    %c0_36 = arith.constant 0 : index
    %c4 = arith.constant 4 : index
    %c0_37 = arith.constant 0 : index
    %22 = vector.load %arg8[%c0_36, %c4, %c0_37] : memref<8x12x32xbf16, #tpu.memory_space<vmem>>, vector<8x8x32xbf16>
    %23 = tpu.concatenate %18, %19, %20, %21, %22 in 2 : vector<8x8x32xbf16>, vector<8x8x32xbf16>, vector<8x8x32xbf16>, vector<8x8x32xbf16>, vector<8x8x32xbf16> -> vector<8x8x160xbf16>
    %24 = vector.shape_cast %23 : vector<8x8x160xbf16> to vector<64x160xbf16>
    %cst_38 = arith.constant dense<0.000000e+00> : vector<64x128xf32>
    %25 = tpu.matmul %24, %17, %cst_38 {dimension_numbers = #tpu.dot_dimension_numbers<[1], [0], [0], [1], [0, 0, 1, 1], [], []>} : vector<64x160xbf16>, vector<160x128xbf16>, vector<64x128xf32> -> vector<64x128xf32>
    %26 = vector.shape_cast %25 : vector<64x128xf32> to vector<8x8x128xf32>
    %cst_39 = arith.constant dense<0xFF800000> : vector<8x128xf32>
    %27 = vector.multi_reduction <maximumf>, %26, %cst_39 [1] : vector<8x8x128xf32> to vector<8x128xf32>
    %28 = arith.addf %16, %27 : vector<8x128xf32>
    %c0_40 = arith.constant 0 : index
    %c0_41 = arith.constant 0 : index
    %29 = vector.load %arg4[%c0_40, %c0_41] : memref<1x128xf32, #tpu.memory_space<vmem>>, vector<1x128xf32>
    %30 = vector.broadcast %29 : vector<1x128xf32> to vector<8x128xf32>
    %31 = arith.addf %28, %30 : vector<8x128xf32>
    %cst_42 = arith.constant 0.000000e+00 : f32
    %32 = vector.broadcast %cst_42 : f32 to vector<8x128xf32>
    %33 = arith.maximumf %31, %32 : vector<8x128xf32>
    %c0_43 = arith.constant 0 : index
    %c0_44 = arith.constant 0 : index
    %34 = vector.load %arg5[%c0_43, %c0_44] : memref<128x128xf32, #tpu.memory_space<vmem>>, vector<128x128xf32>
    %cst_45 = arith.constant dense<0.000000e+00> : vector<8x128xf32>
    %35 = tpu.matmul %33, %34, %cst_45 {dimension_numbers = #tpu.dot_dimension_numbers<[1], [0], [0], [1], [0, 0, 1, 1], [], []>} : vector<8x128xf32>, vector<128x128xf32>, vector<8x128xf32> -> vector<8x128xf32>
    %c0_46 = arith.constant 0 : index
    %c0_47 = arith.constant 0 : index
    %36 = vector.load %arg6[%c0_46, %c0_47] : memref<1x128xf32, #tpu.memory_space<vmem>>, vector<1x128xf32>
    %37 = vector.broadcast %36 : vector<1x128xf32> to vector<8x128xf32>
    %38 = arith.addf %35, %37 : vector<8x128xf32>
    %39 = tpu.iota {dimensions = array<i32: 1>} : vector<8x128xi32>
    %c4_i32 = arith.constant 4 : i32
    %40 = vector.broadcast %c4_i32 : i32 to vector<8x128xi32>
    %41 = arith.cmpi slt, %39, %40 : vector<8x128xi32>
    %cst_48 = arith.constant -1.000000e+30 : f32
    %42 = vector.broadcast %cst_48 : f32 to vector<8x128xf32>
    %43 = arith.select %41, %38, %42 : vector<8x128xi1>, vector<8x128xf32>
    %cst_49 = arith.constant dense<0xFF800000> : vector<8xf32>
    %44 = vector.multi_reduction <maximumf>, %43, %cst_49 [1] : vector<8x128xf32> to vector<8xf32>
    %45 = vector.shape_cast %44 : vector<8xf32> to vector<8x1xf32>
    %46 = vector.broadcast %45 : vector<8x1xf32> to vector<8x128xf32>
    %47 = arith.subf %38, %46 : vector<8x128xf32>
    %cst_50 = arith.constant -1.000000e+30 : f32
    %48 = vector.broadcast %cst_50 : f32 to vector<8x128xf32>
    %49 = arith.select %41, %47, %48 : vector<8x128xi1>, vector<8x128xf32>
    %50 = math.exp %49 : vector<8x128xf32>
    %cst_51 = arith.constant dense<0.000000e+00> : vector<8xf32>
    %51 = vector.multi_reduction <add>, %50, %cst_51 [1] : vector<8x128xf32> to vector<8xf32>
    %52 = vector.shape_cast %51 : vector<8xf32> to vector<8x1xf32>
    %53 = math.log %52 : vector<8x1xf32>
    %54 = vector.broadcast %53 : vector<8x1xf32> to vector<8x128xf32>
    %55 = arith.subf %47, %54 : vector<8x128xf32>
    %c0_52 = arith.constant 0 : index
    %c0_53 = arith.constant 0 : index
    %56 = vector.load %arg7[%c0_52, %c0_53] : memref<8x128xf32, #tpu.memory_space<vmem>>, vector<8x128xf32>
    tpu.vector_store %arg7[%c0_52, %c0_53], %55 {strides = array<i32>} : memref<8x128xf32, #tpu.memory_space<vmem>>, vector<8x128xf32>,
    return
  }
  func.func @transform_0(%arg0: i32) -> (i32, i32, i32) {
    %c0_i32 = arith.constant 0 : i32
    %c0_i32_0 = arith.constant 0 : i32
    %c0_i32_1 = arith.constant 0 : i32
    return %arg0, %c0_i32, %c0_i32_0 : i32, i32, i32
  }
  func.func @transform_1(%arg0: i32) -> (i32, i32) {
    %c0_i32 = arith.constant 0 : i32
    %c0_i32_0 = arith.constant 0 : i32
    %c0_i32_1 = arith.constant 0 : i32
    return %c0_i32, %c0_i32_0 : i32, i32
  }
  func.func @transform_2(%arg0: i32) -> (i32, i32) {
    %c0_i32 = arith.constant 0 : i32
    %c0_i32_0 = arith.constant 0 : i32
    %c0_i32_1 = arith.constant 0 : i32
    return %c0_i32, %c0_i32_0 : i32, i32
  }
  func.func @transform_3(%arg0: i32) -> (i32, i32) {
    %c0_i32 = arith.constant 0 : i32
    %c0_i32_0 = arith.constant 0 : i32
    %c0_i32_1 = arith.constant 0 : i32
    return %c0_i32, %c0_i32_0 : i32, i32
  }
  func.func @transform_4(%arg0: i32) -> (i32, i32) {
    %c0_i32 = arith.constant 0 : i32
    %c0_i32_0 = arith.constant 0 : i32
    %c0_i32_1 = arith.constant 0 : i32
    return %c0_i32, %c0_i32_0 : i32, i32
  }
  func.func @transform_5(%arg0: i32) -> (i32, i32) {
    %c0_i32 = arith.constant 0 : i32
    %c0_i32_0 = arith.constant 0 : i32
    %c0_i32_1 = arith.constant 0 : i32
    return %c0_i32, %c0_i32_0 : i32, i32
  }
  func.func @transform_6(%arg0: i32) -> (i32, i32) {
    %c0_i32 = arith.constant 0 : i32
    %c0_i32_0 = arith.constant 0 : i32
    return %arg0, %c0_i32 : i32, i32
  }
}

</mosaic_0001>

<llo_original>
// kernel: tpu_custom_call.1
$region0: #{tpu_custom_call.1}
  #allocation0 [shape = 'u32[]', space=smem, size = 0x4, offset = 0x4, fixed_abs, tag = 'smem constant byte address 0x4 - core index']
  #allocation1 [shape = 'u32[144,128]{1,0:T(1,128)}', space=vmem, size = 0x12000, scoped, tag = 'internal scratch']
  #allocation2 [shape = 'bf16[8,12,32]{2,1,0:T(8,128)(2,1)}', space=vmem, size = 0x8000, scoped, tag = 'scratch operand']
  %s0 = inlined_call_operand.hbm [shape: bf16[16,8,32], index: 0, kind: input, shape index: {}]
  %s1 = inlined_call_operand.hbm [shape: bf16[96,128], index: 1, kind: input, shape index: {}]
  %s2 = inlined_call_operand.hbm [shape: bf16[160,128], index: 2, kind: input, shape index: {}]
  %s3 = inlined_call_operand.vmem [shape: f32[1,128], index: 3, kind: input, shape index: {}]
  %s4 = inlined_call_operand.hbm [shape: f32[128,128], index: 4, kind: input, shape index: {}]
  %s5 = inlined_call_operand.vmem [shape: f32[1,128], index: 5, kind: input, shape index: {}]
  %s6 = inlined_call_operand.hbm [shape: f32[16,128], index: 6, kind: output, shape index: {}]
  %s7 = sld [smem:[#allocation0]]
  $region73: #{tpu_custom_call.1} parent=0
    _
  %s9 = ssub.s32 1, %s7
  %s10 = scalar_select 0, %s9, %s7
  $region1: #{tpu_custom_call.1} parent=0
    #allocation3 [shape = 'u8[32768]{0}', space=vmem, size = 0x8000, scoped, tag = 'input window, operand 0']
    #allocation4 [shape = 's32[2]{0}', space=sflag, size = 0x8, scoped, tag = 'scoped memory for tpu_custom_call.1']
    #allocation5 [shape = 's32[2]{0}', space=sflag, size = 0x8, scoped, tag = 'scoped memory for tpu_custom_call.1']
    #allocation6 [shape = 'u8[24576]{0}', space=vmem, size = 0x6000, scoped, tag = 'input window, operand 1, single buffered']
    #allocation7 [shape = 's32[1]{0}', space=sflag, size = 0x4, scoped, tag = 'scoped memory for tpu_custom_call.1']
    #allocation8 [shape = 'u8[40960]{0}', space=vmem, size = 0xa000, scoped, tag = 'input window, operand 2, single buffered']
    #allocation9 [shape = 'u8[65536]{0}', space=vmem, size = 0x10000, scoped, tag = 'input window, operand 4, single buffered']
    #allocation10 [shape = 's32[1]{0}', space=sflag, size = 0x4, scoped, tag = 'scoped memory for tpu_custom_call.1']
    #allocation11 [shape = 'u8[8192]{0}', space=vmem, size = 0x2000, scoped, tag = 'output window, operand 0']
    %11 = vsyncpa [#allocation4], 0
    %s12 = scalar_lea.sflag [#allocation4], 1
    %13 = vsyncpa %s12, 0
    %14 = vsyncpa [#allocation7], 0
    %15 = vsyncpa [#allocation10], 0
    %16 = vsyncpa [#allocation5], 0
    %s17 = scalar_lea.sflag [#allocation5], 1
    %18 = vsyncpa %s17, 0
    loop: start=0, step=1, limit=4
    $region2: #{tpu_custom_call.1} parent=1 // loop_pre_header
      _
    $region3: #{tpu_custom_call.1} parent=1 // loop_header
      %s20 = sphi 0, %s24
      %p21 = scmp.ge.s32.totalorder %s20, 4
      %s30 = sphi 0, %s32
      %s33 = sphi 0, %s30
      %s34 = sphi 0, %s33
      %s50 = sphi 0, %s34
      %s54 = sphi 0, %s54
      %s56 = sphi 0, %s54
      %s57 = sphi 0, %s56
      %s71 = sphi 0, %s57
      %s75 = sphi 0, %s75
      %s77 = sphi 0, %s75
      %s78 = sphi 0, %s77
      %s92 = sphi 0, %s78
      %s96 = sphi 0, %s96
      %s98 = sphi 0, %s96
      %s99 = sphi 0, %s98
      %s113 = sphi 0, %s99
      %s117 = sphi 0, %s117
      %s119 = sphi 0, %s117
      %s120 = sphi 0, %s119
      %s134 = sphi 0, %s120
      %s138 = sphi 0, %s138
      %s140 = sphi 0, %s138
      %s141 = sphi 0, %s140
      %s155 = sphi 0, %s141
      %s161 = sphi 0, %s163
      %s164 = sphi 0, %s161
      %s165 = sphi 0, %s164
      %s181 = sphi 0, %s165
    $region4: #{tpu_custom_call.1} parent=1 // loop_header_branch
      %23 = sbr.rel (%p21) target = $region8
    $region5: #{tpu_custom_call.1} parent=1 // loop_body
      %s25 = ssub.s32 %s20, 1
      %s26 = ssub.s32 %s20, 2
      %s27 = sadd.s32 %s20, 1
      %s28 = ssub.s32 %s20, %s27
      %p29 = scmp.eq.s32.totalorder %s28, 0
      %s31 = sadd.s32 %s30, 1
      %s32 = scalar_select %p29, %s30, %s31
      %p35 = pneg %p29
      %p36 = scmp.eq.s32.totalorder %s20, 1
      %p37 = por %p35, %p36
      %p38 = scmp.ne.s32.totalorder %s30, %s33
      %p39 = scmp.eq.s32.totalorder %s20, 0
      %p40 = por %p38, %p39
      %p41 = scmp.ne.s32.totalorder %s30, %s33
      %p42 = scmp.eq.s32.totalorder %s25, 1
      %p43 = por %p41, %p42
      %p44 = scmp.ne.s32.totalorder %s33, %s34
      %p45 = scmp.eq.s32.totalorder %s25, 0
      %p46 = por %p44, %p45
      %p47 = scmp.ne.s32.totalorder %s33, %s34
      %p48 = scmp.eq.s32.totalorder %s26, 1
      %p49 = por %p47, %p48
      %p51 = scmp.ne.s32.totalorder %s34, %s50
      %p52 = scmp.eq.s32.totalorder %s26, 0
      %p53 = por %p51, %p52
      %s55 = sadd.s32 %s54, 1
      %p58 = scmp.eq.s32.totalorder %s20, 1
      %p59 = scmp.ne.s32.totalorder %s54, %s56
      %p60 = scmp.eq.s32.totalorder %s20, 0
      %p61 = por %p59, %p60
      %p62 = scmp.ne.s32.totalorder %s54, %s56
      %p63 = scmp.eq.s32.totalorder %s25, 1
      %p64 = por %p62, %p63
      %p65 = scmp.ne.s32.totalorder %s56, %s57
      %p66 = scmp.eq.s32.totalorder %s25, 0
      %p67 = por %p65, %p66
      %p68 = scmp.ne.s32.totalorder %s56, %s57
      %p69 = scmp.eq.s32.totalorder %s26, 1
      %p70 = por %p68, %p69
      %p72 = scmp.ne.s32.totalorder %s57, %s71
      %p73 = scmp.eq.s32.totalorder %s26, 0
      %p74 = por %p72, %p73
      %s76 = sadd.s32 %s75, 1
      %p79 = scmp.eq.s32.totalorder %s20, 1
      %p80 = scmp.ne.s32.totalorder %s75, %s77
      %p81 = scmp.eq.s32.totalorder %s20, 0
      %p82 = por %p80, %p81
      %p83 = scmp.ne.s32.totalorder %s75, %s77
      %p84 = scmp.eq.s32.totalorder %s25, 1
      %p85 = por %p83, %p84
      %p86 = scmp.ne.s32.totalorder %s77, %s78
      %p87 = scmp.eq.s32.totalorder %s25, 0
      %p88 = por %p86, %p87
      %p89 = scmp.ne.s32.totalorder %s77, %s78
      %p90 = scmp.eq.s32.totalorder %s26, 1
      %p91 = por %p89, %p90
      %p93 = scmp.ne.s32.totalorder %s78, %s92
      %p94 = scmp.eq.s32.totalorder %s26, 0
      %p95 = por %p93, %p94
      %s97 = sadd.s32 %s96, 1
      %p100 = scmp.eq.s32.totalorder %s20, 1
      %p101 = scmp.ne.s32.totalorder %s96, %s98
      %p102 = scmp.eq.s32.totalorder %s20, 0
      %p103 = por %p101, %p102
      %p104 = scmp.ne.s32.totalorder %s96, %s98
      %p105 = scmp.eq.s32.totalorder %s25, 1
      %p106 = por %p104, %p105
      %p107 = scmp.ne.s32.totalorder %s98, %s99
      %p108 = scmp.eq.s32.totalorder %s25, 0
      %p109 = por %p107, %p108
      %p110 = scmp.ne.s32.totalorder %s98, %s99
      %p111 = scmp.eq.s32.totalorder %s26, 1
      %p112 = por %p110, %p111
      %p114 = scmp.ne.s32.totalorder %s99, %s113
      %p115 = scmp.eq.s32.totalorder %s26, 0
      %p116 = por %p114, %p115
      %s118 = sadd.s32 %s117, 1
      %p121 = scmp.eq.s32.totalorder %s20, 1
      %p122 = scmp.ne.s32.totalorder %s117, %s119
      %p123 = scmp.eq.s32.totalorder %s20, 0
      %p124 = por %p122, %p123
      %p125 = scmp.ne.s32.totalorder %s117, %s119
      %p126 = scmp.eq.s32.totalorder %s25, 1
      %p127 = por %p125, %p126
      %p128 = scmp.ne.s32.totalorder %s119, %s120
      %p129 = scmp.eq.s32.totalorder %s25, 0
      %p130 = por %p128, %p129
      %p131 = scmp.ne.s32.totalorder %s119, %s120
      %p132 = scmp.eq.s32.totalorder %s26, 1
      %p133 = por %p131, %p132
      %p135 = scmp.ne.s32.totalorder %s120, %s134
      %p136 = scmp.eq.s32.totalorder %s26, 0
      %p137 = por %p135, %p136
      %s139 = sadd.s32 %s138, 1
      %p142 = scmp.eq.s32.totalorder %s20, 1
      %p143 = scmp.ne.s32.totalorder %s138, %s140
      %p144 = scmp.eq.s32.totalorder %s20, 0
      %p145 = por %p143, %p144
      %p146 = scmp.ne.s32.totalorder %s138, %s140
      %p147 = scmp.eq.s32.totalorder %s25, 1
      %p148 = por %p146, %p147
      %p149 = scmp.ne.s32.totalorder %s140, %s141
      %p150 = scmp.eq.s32.totalorder %s25, 0
      %p151 = por %p149, %p150
      %p152 = scmp.ne.s32.totalorder %s140, %s141
      %p153 = scmp.eq.s32.totalorder %s26, 1
      %p154 = por %p152, %p153
      %p156 = scmp.ne.s32.totalorder %s141, %s155
      %p157 = scmp.eq.s32.totalorder %s26, 0
      %p158 = por %p156, %p157
      %s159 = ssub.s32 %s20, %s27
      %p160 = scmp.eq.s32.totalorder %s159, 0
      %s162 = sadd.s32 %s161, 1
      %s163 = scalar_select %p160, %s161, %s162
      %p166 = pneg %p160
      %p167 = scmp.eq.s32.totalorder %s20, 1
      %p168 = por %p166, %p167
      %p169 = scmp.ne.s32.totalorder %s161, %s164
      %p170 = scmp.eq.s32.totalorder %s20, 0
      %p171 = por %p169, %p170
      %p172 = scmp.ne.s32.totalorder %s161, %s164
      %p173 = scmp.eq.s32.totalorder %s25, 1
      %p174 = por %p172, %p173
      %p175 = scmp.ne.s32.totalorder %s164, %s165
      %p176 = scmp.eq.s32.totalorder %s25, 0
      %p177 = por %p175, %p176
      %p178 = scmp.ne.s32.totalorder %s164, %s165
      %p179 = scmp.eq.s32.totalorder %s26, 1
      %p180 = por %p178, %p179
      %p182 = scmp.ne.s32.totalorder %s165, %s181
      %p183 = scmp.eq.s32.totalorder %s26, 0
      %p184 = por %p182, %p183
      %p185 = scmp.le.s32.totalorder 1, %s20
      %p186 = scmp.lt.s32.totalorder %s20, 3
      %p187 = pnand %p185, %p186
      %p188 = pneg %p187
      // Predicated region
      $region9: #{tpu_custom_call.1} parent=5 // pred_check
        _
      $region10: #{tpu_custom_call.1} parent=5 // pred_check_branch
        %190 = sbr.rel (%p187) target = $region12
      $region11: #{tpu_custom_call.1} parent=5 // pred_region
        %s191 = ssub.s32 %s20, 1
        // Predicated region
        $region13: #{tpu_custom_call.1} parent=11 // pred_check
          %p192 = pneg %p67
        $region14: #{tpu_custom_call.1} parent=11 // pred_check_branch
          %194 = sbr.rel (%p192) target = $region16
        $region15: #{tpu_custom_call.1} parent=11 // pred_region
          %s196 = ssub.s32 768, 768
          %197 = vsyncadd [#allocation7], %s196
          %s198 = sshll.u32 [#allocation6], 4
          %s199 = int_to_ptr.vmem [resolvable:$true] %s198
          %204 = dma.hbm_to_vmem [thread:$0]  %s1, 768, %s199, [#allocation7], 64, 64, 4
        $region16: #{tpu_custom_call.1} parent=11 // pred_fallthru
          _
        // Predicated region
        $region17: #{tpu_custom_call.1} parent=11 // pred_check
          %p205 = pneg %p88
        $region18: #{tpu_custom_call.1} parent=11 // pred_check_branch
          %207 = sbr.rel (%p205) target = $region20
        $region19: #{tpu_custom_call.1} parent=11 // pred_region
          %s209 = ssub.s32 1280, 1280
          %210 = vsyncadd [#allocation7], %s209
          %s211 = sshll.u32 [#allocation8], 4
          %s212 = int_to_ptr.vmem [resolvable:$true] %s211
          %217 = dma.hbm_to_vmem [thread:$0]  %s2, 1280, %s212, [#allocation7], 64, 64, 4
        $region20: #{tpu_custom_call.1} parent=11 // pred_fallthru
          _
        // Predicated region
        $region21: #{tpu_custom_call.1} parent=11 // pred_check
          %p218 = pneg %p109
        $region22: #{tpu_custom_call.1} parent=11 // pred_check_branch
          %220 = sbr.rel (%p218) target = $region24
        $region23: #{tpu_custom_call.1} parent=11 // pred_region
          _
        $region24: #{tpu_custom_call.1} parent=11 // pred_fallthru
          _
        // Predicated region
        $region25: #{tpu_custom_call.1} parent=11 // pred_check
          %p221 = pneg %p130
        $region26: #{tpu_custom_call.1} parent=11 // pred_check_branch
          %223 = sbr.rel (%p221) target = $region28
        $region27: #{tpu_custom_call.1} parent=11 // pred_region
          %s225 = ssub.s32 2048, 2048
          %226 = vsyncadd [#allocation10], %s225
          %s227 = sshll.u32 [#allocation9], 4
          %s228 = int_to_ptr.vmem [resolvable:$true] %s227
          %233 = dma.hbm_to_vmem [thread:$0]  %s4, 2048, %s228, [#allocation10], 128, 128, 8
        $region28: #{tpu_custom_call.1} parent=11 // pred_fallthru
          _
        // Predicated region
        $region29: #{tpu_custom_call.1} parent=11 // pred_check
          %p234 = pneg %p151
        $region30: #{tpu_custom_call.1} parent=11 // pred_check_branch
          %236 = sbr.rel (%p234) target = $region32
        $region31: #{tpu_custom_call.1} parent=11 // pred_region
          _
        $region32: #{tpu_custom_call.1} parent=11 // pred_fallthru
          _
      $region12: #{tpu_custom_call.1} parent=5 // pred_fallthru
        _
      %p237 = scmp.lt.s32.totalorder %s20, 2
      // Predicated region
      $region33: #{tpu_custom_call.1} parent=5 // pred_check
        %p238 = pneg %p237
      $region34: #{tpu_custom_call.1} parent=5 // pred_check_branch
        %240 = sbr.rel (%p238) target = $region36
      $region35: #{tpu_custom_call.1} parent=5 // pred_region
        // Predicated region
        $region37: #{tpu_custom_call.1} parent=35 // pred_check
          %p241 = pneg %p40
        $region38: #{tpu_custom_call.1} parent=35 // pred_check_branch
          %243 = sbr.rel (%p241) target = $region40
        $region39: #{tpu_custom_call.1} parent=35 // pred_region
          %s244 = sand.u32 %s30, 1
          %s245 = scalar_lea.sflag [#allocation4], %s244
          %s246 = sand.u32 %s30, 1
          %s247 = smul.addr %s246, 32
          %s248 = scalar_lea.vmem [#allocation3], %s247
          %s249 = smul.u32 8, %s20
          %s251 = ssub.s32 512, 512
          %252 = vsyncadd %s245, %s251
          %s253 = smul.addr %s249, 64
          %s254 = scalar_lea.hbm %s0, %s253
          %s255 = sshll.u32 %s248, 4
          %s256 = int_to_ptr.vmem [resolvable:$true] %s255
          %261 = dma.hbm_to_vmem [thread:$0]  %s254, 512, %s256, %s245, 64, 64, 4
        $region40: #{tpu_custom_call.1} parent=35 // pred_fallthru
          _
      $region36: #{tpu_custom_call.1} parent=5 // pred_fallthru
        _
      %p262 = scmp.le.s32.totalorder 1, %s20
      %p263 = scmp.lt.s32.totalorder %s20, 3
      %p264 = pnand %p262, %p263
      %p265 = pneg %p264
      // Predicated region
      $region41: #{tpu_custom_call.1} parent=5 // pred_check
        _
      $region42: #{tpu_custom_call.1} parent=5 // pred_check_branch
        %267 = sbr.rel (%p264) target = $region44
      $region43: #{tpu_custom_call.1} parent=5 // pred_region
        %s268 = ssub.s32 %s20, 1
        %s269 = sand.u32 %s33, 1
        %s270 = scalar_lea.sflag [#allocation4], %s269
        %s271 = sand.u32 %s33, 1
        %s272 = smul.addr %s271, 32
        %s273 = scalar_lea.vmem [#allocation3], %s272
        // Predicated region
        $region45: #{tpu_custom_call.1} parent=43 // pred_check
          %p274 = pneg %p46
        $region46: #{tpu_custom_call.1} parent=43 // pred_check_branch
          %276 = sbr.rel (%p274) target = $region48
        $region47: #{tpu_custom_call.1} parent=43 // pred_region
          %277 = dma.done %s270, 512
        $region48: #{tpu_custom_call.1} parent=43 // pred_fallthru
          _
        // Predicated region
        $region49: #{tpu_custom_call.1} parent=43 // pred_check
          %p278 = pneg %p67
        $region50: #{tpu_custom_call.1} parent=43 // pred_check_branch
          %280 = sbr.rel (%p278) target = $region52
        $region51: #{tpu_custom_call.1} parent=43 // pred_region
          %281 = dma.done [#allocation7], 768
        $region52: #{tpu_custom_call.1} parent=43 // pred_fallthru
          _
        // Predicated region
        $region53: #{tpu_custom_call.1} parent=43 // pred_check
          %p282 = pneg %p88
        $region54: #{tpu_custom_call.1} parent=43 // pred_check_branch
          %284 = sbr.rel (%p282) target = $region56
        $region55: #{tpu_custom_call.1} parent=43 // pred_region
          %285 = dma.done [#allocation7], 1280
        $region56: #{tpu_custom_call.1} parent=43 // pred_fallthru
          _
        // Predicated region
        $region57: #{tpu_custom_call.1} parent=43 // pred_check
          %p286 = pneg %p130
        $region58: #{tpu_custom_call.1} parent=43 // pred_check_branch
          %288 = sbr.rel (%p286) target = $region60
        $region59: #{tpu_custom_call.1} parent=43 // pred_region
          %289 = dma.done [#allocation10], 2048
        $region60: #{tpu_custom_call.1} parent=43 // pred_fallthru
          _
        %s290 = sand.u32 %s33, 1
        %s291 = scalar_lea.sflag [#allocation4], %s290
        %s292 = sand.u32 %s33, 1
        %s293 = smul.addr %s292, 32
        %s294 = scalar_lea.vmem [#allocation3], %s293
        %p295 = pneg %p46
        %p296 = pneg %p43
        %p297 = pneg %p67
        %p298 = pneg %p64
        %p299 = pneg %p88
        %p300 = pneg %p85
        %p301 = pneg %p109
        %p302 = pneg %p106
        %p303 = pneg %p130
        %p304 = pneg %p127
        %p305 = pneg %p151
        %p306 = pneg %p148
        %p307 = pneg %p177
        %p308 = pneg %p174
        %s309 = sand.u32 %s164, 1
        %s310 = scalar_lea.sflag [#allocation5], %s309
        %s311 = sand.u32 %s164, 1
        %s312 = smul.addr %s311, 8
        %s313 = scalar_lea.vmem [#allocation11], %s312
        %s314 = smul.u32 8, %s25
        %vm316 = vcmask 253952
        %317 = vst.msk [vmem:[#allocation2] sm:$0x1] %vm316, 0
        %318 = vst.msk [vmem:[#allocation2 + $0x8] sm:$0x1] %vm316, 0
        %319 = vst.msk [vmem:[#allocation2 + $0x10] sm:$0x1] %vm316, 0
        %320 = vst.msk [vmem:[#allocation2 + $0x18] sm:$0x1] %vm316, 0
        %321 = vst.msk [vmem:[#allocation2 + $0x20] sm:$0x1] %vm316, 0
        %322 = vst.msk [vmem:[#allocation2 + $0x28] sm:$0x1] %vm316, 0
        %323 = vst.msk [vmem:[#allocation2 + $0x30] sm:$0x1] %vm316, 0
        %324 = vst.msk [vmem:[#allocation2 + $0x38] sm:$0x1] %vm316, 0
        %vm325 = vcmask 254977
        %326 = vst.msk [vmem:[#allocation2 + $0x4] sm:$0x2] %vm325, 0
        %327 = vst.msk [vmem:[#allocation2 + $0xc] sm:$0x2] %vm325, 0
        %328 = vst.msk [vmem:[#allocation2 + $0x14] sm:$0x2] %vm325, 0
        %329 = vst.msk [vmem:[#allocation2 + $0x1c] sm:$0x2] %vm325, 0
        %330 = vst.msk [vmem:[#allocation2 + $0x24] sm:$0x2] %vm325, 0
        %331 = vst.msk [vmem:[#allocation2 + $0x2c] sm:$0x2] %vm325, 0
        %332 = vst.msk [vmem:[#allocation2 + $0x34] sm:$0x2] %vm325, 0
        %333 = vst.msk [vmem:[#allocation2 + $0x3c] sm:$0x2] %vm325, 0
        %v334 = vld [vmem:[%s273] sm:$0xf]
        %v335 = vld [vmem:[%s273 + $0x4] sm:$0xf]
        %v336 = vld [vmem:[%s273 + $0x8] sm:$0xf]
        %v337 = vld [vmem:[%s273 + $0xc] sm:$0xf]
        %v338 = vld [vmem:[%s273 + $0x10] sm:$0xf]
        %v339 = vld [vmem:[%s273 + $0x14] sm:$0xf]
        %v340 = vld [vmem:[%s273 + $0x18] sm:$0xf]
        %v341 = vld [vmem:[%s273 + $0x1c] sm:$0xf]
        %v350 = vrot.slane %v334, 7
        %v351 = vrot.slane %v350, 4
        %v352 = vrot.slane %v335, 7
        %v353 = vrot.slane %v352, 4
        %v354 = vrot.slane %v336, 7
        %v355 = vrot.slane %v354, 4
        %v356 = vrot.slane %v337, 7
        %v357 = vrot.slane %v356, 4
        %v358 = vrot.slane %v338, 7
        %v359 = vrot.slane %v358, 4
        %v360 = vrot.slane %v339, 7
        %v361 = vrot.slane %v360, 4
        %v362 = vrot.slane %v340, 7
        %v363 = vrot.slane %v362, 4
        %v364 = vrot.slane %v341, 7
        %v365 = vrot.slane %v364, 4
        %vm382 = vcmask 257025
        %383 = vst.msk [vmem:[#allocation2] sm:$0xe] %vm382, %v350
        %384 = vst.msk [vmem:[#allocation2 + $0x4] sm:$0x1] %vm316, %v351
        %385 = vst.msk [vmem:[#allocation2 + $0x8] sm:$0xe] %vm382, %v352
        %386 = vst.msk [vmem:[#allocation2 + $0xc] sm:$0x1] %vm316, %v353
        %387 = vst.msk [vmem:[#allocation2 + $0x10] sm:$0xe] %vm382, %v354
        %388 = vst.msk [vmem:[#allocation2 + $0x14] sm:$0x1] %vm316, %v355
        %389 = vst.msk [vmem:[#allocation2 + $0x18] sm:$0xe] %vm382, %v356
        %390 = vst.msk [vmem:[#allocation2 + $0x1c] sm:$0x1] %vm316, %v357
        %391 = vst.msk [vmem:[#allocation2 + $0x20] sm:$0xe] %vm382, %v358
        %392 = vst.msk [vmem:[#allocation2 + $0x24] sm:$0x1] %vm316, %v359
        %393 = vst.msk [vmem:[#allocation2 + $0x28] sm:$0xe] %vm382, %v360
        %394 = vst.msk [vmem:[#allocation2 + $0x2c] sm:$0x1] %vm316, %v361
        %395 = vst.msk [vmem:[#allocation2 + $0x30] sm:$0xe] %vm382, %v362
        %396 = vst.msk [vmem:[#allocation2 + $0x34] sm:$0x1] %vm316, %v363
        %397 = vst.msk [vmem:[#allocation2 + $0x38] sm:$0xe] %vm382, %v364
        %398 = vst.msk [vmem:[#allocation2 + $0x3c] sm:$0x1] %vm316, %v365
        %v399 = vld [vmem:[#allocation6] sm:$0xf]
        %v400 = vld [vmem:[#allocation6 + $0x4] sm:$0xf]
        %v401 = vld [vmem:[#allocation6 + $0x8] sm:$0xf]
        %v402 = vld [vmem:[#allocation6 + $0xc] sm:$0xf]
        %v403 = vld [vmem:[#allocation6 + $0x10] sm:$0xf]
        %v404 = vld [vmem:[#allocation6 + $0x14] sm:$0xf]
        %v405 = vld [vmem:[#allocation6 + $0x18] sm:$0xf]
        %v406 = vld [vmem:[#allocation6 + $0x1c] sm:$0xf]
        %v407 = vld [vmem:[#allocation6 + $0x20] sm:$0xf]
        %v408 = vld [vmem:[#allocation6 + $0x24] sm:$0xf]
        %v409 = vld [vmem:[#allocation6 + $0x28] sm:$0xf]
        %v410 = vld [vmem:[#allocation6 + $0x2c] sm:$0xf]
        %v411 = vld [vmem:[#allocation2] sm:$0xf]
        %v412 = vld [vmem:[#allocation2 + $0x4] sm:$0x1]
        %v413 = vld [vmem:[#allocation2 + $0x8] sm:$0xf]
        %v414 = vld [vmem:[#allocation2 + $0xc] sm:$0x1]
        %v415 = vld [vmem:[#allocation2 + $0x10] sm:$0xf]
        %v416 = vld [vmem:[#allocation2 + $0x14] sm:$0x1]
        %v417 = vld [vmem:[#allocation2 + $0x18] sm:$0xf]
        %v418 = vld [vmem:[#allocation2 + $0x1c] sm:$0x1]
        %v419 = vld [vmem:[#allocation2 + $0x20] sm:$0xf]
        %v420 = vld [vmem:[#allocation2 + $0x24] sm:$0x1]
        %v421 = vld [vmem:[#allocation2 + $0x28] sm:$0xf]
        %v422 = vld [vmem:[#allocation2 + $0x2c] sm:$0x1]
        %v423 = vld [vmem:[#allocation2 + $0x30] sm:$0xf]
        %v424 = vld [vmem:[#allocation2 + $0x34] sm:$0x1]
        %v425 = vld [vmem:[#allocation2 + $0x38] sm:$0xf]
        %v426 = vld [vmem:[#allocation2 + $0x3c] sm:$0x1]
        %v427 = vld [vmem:[#allocation2] sm:$0xe]
        %v428 = vld [vmem:[#allocation2 + $0x8] sm:$0xe]
        %v429 = vld [vmem:[#allocation2 + $0x10] sm:$0xe]
        %v430 = vld [vmem:[#allocation2 + $0x18] sm:$0xe]
        %v431 = vld [vmem:[#allocation2 + $0x20] sm:$0xe]
        %v432 = vld [vmem:[#allocation2 + $0x28] sm:$0xe]
        %v433 = vld [vmem:[#allocation2 + $0x30] sm:$0xe]
        %v434 = vld [vmem:[#allocation2 + $0x38] sm:$0xe]
        %v435 = vld [vmem:[#allocation2 + $0x4] sm:$0x3]
        %v436 = vld [vmem:[#allocation2 + $0xc] sm:$0x3]
        %v437 = vld [vmem:[#allocation2 + $0x14] sm:$0x3]
        %v438 = vld [vmem:[#allocation2 + $0x1c] sm:$0x3]
        %v439 = vld [vmem:[#allocation2 + $0x24] sm:$0x3]
        %v440 = vld [vmem:[#allocation2 + $0x2c] sm:$0x3]
        %v441 = vld [vmem:[#allocation2 + $0x34] sm:$0x3]
        %v442 = vld [vmem:[#allocation2 + $0x3c] sm:$0x3]
        %v459 = vunpack.c.l.b16 %v411
        %v460 = vunpack.c.l.b16 %v412
        %v461 = vunpack.c.l.b16 %v413
        %v462 = vunpack.c.l.b16 %v414
        %v463 = vunpack.c.l.b16 %v415
        %v464 = vunpack.c.l.b16 %v416
        %v465 = vunpack.c.l.b16 %v417
        %v466 = vunpack.c.l.b16 %v418
        %v467 = vunpack.c.l.b16 %v419
        %v468 = vunpack.c.l.b16 %v420
        %v469 = vunpack.c.l.b16 %v421
        %v470 = vunpack.c.l.b16 %v422
        %v471 = vunpack.c.l.b16 %v423
        %v472 = vunpack.c.l.b16 %v424
        %v473 = vunpack.c.l.b16 %v425
        %v474 = vunpack.c.l.b16 %v426
        %v475 = vpack.c.b16 %v460, %v459
        %v476 = vpack.c.b16 %v462, %v461
        %v477 = vpack.c.b16 %v464, %v463
        %v478 = vpack.c.b16 %v466, %v465
        %v479 = vpack.c.b16 %v468, %v467
        %v480 = vpack.c.b16 %v470, %v469
        %v481 = vpack.c.b16 %v472, %v471
        %v482 = vpack.c.b16 %v474, %v473
        %v491 = vunpack.c.l.b16 %v427
        %v492 = vunpack.c.l.b16 %v428
        %v493 = vunpack.c.l.b16 %v429
        %v494 = vunpack.c.l.b16 %v430
        %v495 = vunpack.c.l.b16 %v431
        %v496 = vunpack.c.l.b16 %v432
        %v497 = vunpack.c.l.b16 %v433
        %v498 = vunpack.c.l.b16 %v434
        %v499 = vpack.c.b16 %v460, %v491
        %v500 = vpack.c.b16 %v462, %v492
        %v501 = vpack.c.b16 %v464, %v493
        %v502 = vpack.c.b16 %v466, %v494
        %v503 = vpack.c.b16 %v468, %v495
        %v504 = vpack.c.b16 %v470, %v496
        %v505 = vpack.c.b16 %v472, %v497
        %v506 = vpack.c.b16 %v474, %v498
        %v508 = vshrl.u32 %v499, 16
        %v510 = vshll.u32 %v499, 16
        %v512 = vrot.slane %v510, 1
        %v513 = vor.u32 %v508, %v512
        %v515 = vshrl.u32 %v500, 16
        %v517 = vshll.u32 %v500, 16
        %v519 = vrot.slane %v517, 1
        %v520 = vor.u32 %v515, %v519
        %v522 = vshrl.u32 %v501, 16
        %v524 = vshll.u32 %v501, 16
        %v526 = vrot.slane %v524, 1
        %v527 = vor.u32 %v522, %v526
        %v529 = vshrl.u32 %v502, 16
        %v531 = vshll.u32 %v502, 16
        %v533 = vrot.slane %v531, 1
        %v534 = vor.u32 %v529, %v533
        %v536 = vshrl.u32 %v503, 16
        %v538 = vshll.u32 %v503, 16
        %v540 = vrot.slane %v538, 1
        %v541 = vor.u32 %v536, %v540
        %v543 = vshrl.u32 %v504, 16
        %v545 = vshll.u32 %v504, 16
        %v547 = vrot.slane %v545, 1
        %v548 = vor.u32 %v543, %v547
        %v550 = vshrl.u32 %v505, 16
        %v552 = vshll.u32 %v505, 16
        %v554 = vrot.slane %v552, 1
        %v555 = vor.u32 %v550, %v554
        %v557 = vshrl.u32 %v506, 16
        %v559 = vshll.u32 %v506, 16
        %v561 = vrot.slane %v559, 1
        %v562 = vor.u32 %v557, %v561
        %563 = vrot.lane.b32.xlu0 %v513, 32
        %v564 = vpop.permute.xlu0 %563
        %565 = vrot.lane.b32.xlu0 %v520, 32
        %v566 = vpop.permute.xlu0 %565
        %567 = vrot.lane.b32.xlu0 %v527, 32
        %v568 = vpop.permute.xlu0 %567
        %569 = vrot.lane.b32.xlu0 %v534, 32
        %v570 = vpop.permute.xlu0 %569
        %571 = vrot.lane.b32.xlu0 %v541, 32
        %v572 = vpop.permute.xlu0 %571
        %573 = vrot.lane.b32.xlu0 %v548, 32
        %v574 = vpop.permute.xlu0 %573
        %575 = vrot.lane.b32.xlu0 %v555, 32
        %v576 = vpop.permute.xlu0 %575
        %577 = vrot.lane.b32.xlu0 %v562, 32
        %v578 = vpop.permute.xlu0 %577
        %v587 = vunpack.c.l.b16 %v435
        %v588 = vunpack.c.l.b16 %v436
        %v589 = vunpack.c.l.b16 %v437
        %v590 = vunpack.c.l.b16 %v438
        %v591 = vunpack.c.l.b16 %v439
        %v592 = vunpack.c.l.b16 %v440
        %v593 = vunpack.c.l.b16 %v441
        %v594 = vunpack.c.l.b16 %v442
        %v595 = vpack.c.b16 %v587, %v491
        %v596 = vpack.c.b16 %v588, %v492
        %v597 = vpack.c.b16 %v589, %v493
        %v598 = vpack.c.b16 %v590, %v494
        %v599 = vpack.c.b16 %v591, %v495
        %v600 = vpack.c.b16 %v592, %v496
        %v601 = vpack.c.b16 %v593, %v497
        %v602 = vpack.c.b16 %v594, %v498
        %v603 = vrot.slane %v595, 1
        %v604 = vrot.slane %v596, 1
        %v605 = vrot.slane %v597, 1
        %v606 = vrot.slane %v598, 1
        %v607 = vrot.slane %v599, 1
        %v608 = vrot.slane %v600, 1
        %v609 = vrot.slane %v601, 1
        %v610 = vrot.slane %v602, 1
        %611 = vrot.lane.b32.xlu0 %v603, 64
        %v612 = vpop.permute.xlu0 %611
        %613 = vrot.lane.b32.xlu0 %v604, 64
        %v614 = vpop.permute.xlu0 %613
        %615 = vrot.lane.b32.xlu0 %v605, 64
        %v616 = vpop.permute.xlu0 %615
        %617 = vrot.lane.b32.xlu0 %v606, 64
        %v618 = vpop.permute.xlu0 %617
        %619 = vrot.lane.b32.xlu0 %v607, 64
        %v620 = vpop.permute.xlu0 %619
        %621 = vrot.lane.b32.xlu0 %v608, 64
        %v622 = vpop.permute.xlu0 %621
        %623 = vrot.lane.b32.xlu0 %v609, 64
        %v624 = vpop.permute.xlu0 %623
        %625 = vrot.lane.b32.xlu0 %v610, 64
        %v626 = vpop.permute.xlu0 %625
        %vm627 = vcmask 261120
        %v630 = vsel %vm627, %v475, %v564
        %v633 = vsel %vm627, %v476, %v566
        %v636 = vsel %vm627, %v477, %v568
        %v639 = vsel %vm627, %v478, %v570
        %v642 = vsel %vm627, %v479, %v572
        %v645 = vsel %vm627, %v480, %v574
        %v648 = vsel %vm627, %v481, %v576
        %v651 = vsel %vm627, %v482, %v578
        %vm652 = vcmask 523264
        %v654 = vsel %vm652, %v630, %v612
        %v656 = vsel %vm652, %v633, %v614
        %v658 = vsel %vm652, %v636, %v616
        %v660 = vsel %vm652, %v639, %v618
        %v662 = vsel %vm652, %v642, %v620
        %v664 = vsel %vm652, %v645, %v622
        %v666 = vsel %vm652, %v648, %v624
        %v668 = vsel %vm652, %v651, %v626
        %v677 = vunpack.c.l.b16 %v654
        %v678 = vunpack.c.h.b16 %v654
        %v679 = vunpack.c.l.b16 %v656
        %v680 = vunpack.c.h.b16 %v656
        %v681 = vunpack.c.l.b16 %v658
        %v682 = vunpack.c.h.b16 %v658
        %v683 = vunpack.c.l.b16 %v660
        %v684 = vunpack.c.h.b16 %v660
        %v685 = vunpack.c.l.b16 %v662
        %v686 = vunpack.c.h.b16 %v662
        %v687 = vunpack.c.l.b16 %v664
        %v688 = vunpack.c.h.b16 %v664
        %v689 = vunpack.c.l.b16 %v666
        %v690 = vunpack.c.h.b16 %v666
        %v691 = vunpack.c.l.b16 %v668
        %v692 = vunpack.c.h.b16 %v668
        %v693 = vpack.c.b16 %v677, %v677
        %v694 = vpack.c.b16 %v678, %v678
        %v695 = vpack.c.b16 %v679, %v679
        %v696 = vpack.c.b16 %v680, %v680
        %v697 = vpack.c.b16 %v681, %v681
        %v698 = vpack.c.b16 %v682, %v682
        %v699 = vpack.c.b16 %v683, %v683
        %v700 = vpack.c.b16 %v684, %v684
        %v701 = vpack.c.b16 %v685, %v685
        %v702 = vpack.c.b16 %v686, %v686
        %v703 = vpack.c.b16 %v687, %v687
        %v704 = vpack.c.b16 %v688, %v688
        %v705 = vpack.c.b16 %v689, %v689
        %v706 = vpack.c.b16 %v690, %v690
        %v707 = vpack.c.b16 %v691, %v691
        %v708 = vpack.c.b16 %v692, %v692
        %vm709 = vsmask.f32 3328
        %vm710 = vsmask.f32 7440
        %vm711 = vmor %vm709, %vm710
        %v713 = vshrl.u32 %v693, 16
        %v715 = vrot.slane %v713, 4
        %v716 = vshll.u32 %v693, 16
        %v718 = vrot.slane %v716, 5
        %v719 = vor.u32 %v715, %v718
        %v720 = vrot.slane %v719, 4
        %v722 = vshll.u32 %v694, 16
        %v724 = vrot.slane %v722, 5
        %v725 = vsel %vm711, %v720, %v724
        %v727 = vshrl.u32 %v695, 16
        %v729 = vrot.slane %v727, 4
        %v730 = vshll.u32 %v695, 16
        %v732 = vrot.slane %v730, 5
        %v733 = vor.u32 %v729, %v732
        %v734 = vrot.slane %v733, 4
        %v736 = vshll.u32 %v696, 16
        %v738 = vrot.slane %v736, 5
        %v739 = vsel %vm711, %v734, %v738
        %v741 = vshrl.u32 %v697, 16
        %v743 = vrot.slane %v741, 4
        %v744 = vshll.u32 %v697, 16
        %v746 = vrot.slane %v744, 5
        %v747 = vor.u32 %v743, %v746
        %v748 = vrot.slane %v747, 4
        %v750 = vshll.u32 %v698, 16
        %v752 = vrot.slane %v750, 5
        %v753 = vsel %vm711, %v748, %v752
        %v755 = vshrl.u32 %v699, 16
        %v757 = vrot.slane %v755, 4
        %v758 = vshll.u32 %v699, 16
        %v760 = vrot.slane %v758, 5
        %v761 = vor.u32 %v757, %v760
        %v762 = vrot.slane %v761, 4
        %v764 = vshll.u32 %v700, 16
        %v766 = vrot.slane %v764, 5
        %v767 = vsel %vm711, %v762, %v766
        %v769 = vshrl.u32 %v701, 16
        %v771 = vrot.slane %v769, 4
        %v772 = vshll.u32 %v701, 16
        %v774 = vrot.slane %v772, 5
        %v775 = vor.u32 %v771, %v774
        %v776 = vrot.slane %v775, 4
        %v778 = vshll.u32 %v702, 16
        %v780 = vrot.slane %v778, 5
        %v781 = vsel %vm711, %v776, %v780
        %v783 = vshrl.u32 %v703, 16
        %v785 = vrot.slane %v783, 4
        %v786 = vshll.u32 %v703, 16
        %v788 = vrot.slane %v786, 5
        %v789 = vor.u32 %v785, %v788
        %v790 = vrot.slane %v789, 4
        %v792 = vshll.u32 %v704, 16
        %v794 = vrot.slane %v792, 5
        %v795 = vsel %vm711, %v790, %v794
        %v797 = vshrl.u32 %v705, 16
        %v799 = vrot.slane %v797, 4
        %v800 = vshll.u32 %v705, 16
        %v802 = vrot.slane %v800, 5
        %v803 = vor.u32 %v799, %v802
        %v804 = vrot.slane %v803, 4
        %v806 = vshll.u32 %v706, 16
        %v808 = vrot.slane %v806, 5
        %v809 = vsel %vm711, %v804, %v808
        %v811 = vshrl.u32 %v707, 16
        %v813 = vrot.slane %v811, 4
        %v814 = vshll.u32 %v707, 16
        %v816 = vrot.slane %v814, 5
        %v817 = vor.u32 %v813, %v816
        %v818 = vrot.slane %v817, 4
        %v820 = vshll.u32 %v708, 16
        %v822 = vrot.slane %v820, 5
        %v823 = vsel %vm711, %v818, %v822
        %v824 = vunpack.c.l.b16 %v725
        %v825 = vunpack.c.l.b16 %v739
        %v826 = vunpack.c.l.b16 %v753
        %v827 = vunpack.c.l.b16 %v767
        %v828 = vunpack.c.l.b16 %v781
        %v829 = vunpack.c.l.b16 %v795
        %v830 = vunpack.c.l.b16 %v809
        %v831 = vunpack.c.l.b16 %v823
        %v832 = vpack.c.b16 %v825, %v824
        %v833 = vpack.c.b16 %v827, %v826
        %v834 = vpack.c.b16 %v829, %v828
        %v835 = vpack.c.b16 %v831, %v830
        %v848 = vunpack.c.l.b16 %v399
        %v849 = vunpack.c.l.b16 %v400
        %v850 = vunpack.c.l.b16 %v401
        %v851 = vunpack.c.l.b16 %v402
        %v852 = vunpack.c.l.b16 %v403
        %v853 = vunpack.c.l.b16 %v404
        %v854 = vunpack.c.l.b16 %v405
        %v855 = vunpack.c.l.b16 %v406
        %v856 = vunpack.c.l.b16 %v407
        %v857 = vunpack.c.l.b16 %v408
        %v858 = vunpack.c.l.b16 %v409
        %v859 = vunpack.c.l.b16 %v410
        %v860 = vpack.c.b16 %v849, %v848
        %v861 = vpack.c.b16 %v851, %v850
        %v862 = vpack.c.b16 %v853, %v852
        %v863 = vpack.c.b16 %v855, %v854
        %v864 = vpack.c.b16 %v857, %v856
        %v865 = vpack.c.b16 %v859, %v858
        %vm872 = vcmask 785408
        %v874 = vsel %vm872, %v832, 0
        %v877 = vsel %vm872, %v833, 0
        %v880 = vsel %vm872, %v834, 0
        %v883 = vsel %vm872, %v835, 0
        %885 = vmatprep.subr.bf16.mxu0 0
        %886 = vmatpush1.bf16.msra.mxu0 0
        %887 = vmatprep.subr.bf16.mxu0 0
        %888 = vmatpush1.bf16.msra.mxu0 0
        %889 = vmatprep.subr.bf16.mxu0 0
        %890 = vmatpush1.bf16.msra.mxu0 %v865
        %891 = vmatprep.subr.bf16.mxu0 0
        %892 = vmatpush1.bf16.msra.mxu0 %v864
        %893 = vmatprep.subr.bf16.mxu0 0
        %894 = vmatpush1.bf16.msra.mxu0 %v863
        %895 = vmatprep.subr.bf16.mxu0 0
        %896 = vmatpush1.bf16.msra.mxu0 %v862
        %897 = vmatprep.subr.bf16.mxu0 0
        %898 = vmatpush1.bf16.msra.mxu0 %v861
        %899 = vmatprep.subr.bf16.mxu0 0
        %900 = vmatpush1.bf16.msra.mxu0 %v860
        %901 = vmatprep.subr.bf16.mxu0 0
        %902 = vmatpush2.bf16.msra.mxu0 0
        %903 = vmatprep.subr.bf16.mxu0 0
        %904 = vmatpush2.bf16.msra.mxu0 0
        %905 = vmatprep.subr.bf16.mxu0 0
        %906 = vmatpush2.bf16.msra.mxu0 0
        %907 = vmatprep.subr.bf16.mxu0 0
        %908 = vmatpush2.bf16.msra.mxu0 0
        %909 = vmatprep.subr.bf16.mxu0 0
        %910 = vmatpush2.bf16.msra.mxu0 0
        %911 = vmatprep.subr.bf16.mxu0 0
        %912 = vmatpush2.bf16.msra.mxu0 0
        %913 = vmatprep.subr.bf16.mxu0 0
        %914 = vmatpush2.bf16.msra.mxu0 0
        %915 = vmatprep.subr.bf16.mxu0 0
        %916 = vmatpush2.bf16.msra.mxu0 0
        %917 = vmatprep.mubr.bf16.mxu0 0
        %918 = vmatmul.mubr.bf16.gmra.mxu0 %v874
        %v919 = vpop.f32.mrf.mxu0
        %v920 = vadd.f32 0.0, %v919
        %v921 = vpop.f32.mrf.mxu0
        %v922 = vpop.f32.mrf.mxu0
        %v923 = vadd.f32 0.0, %v922
        %v924 = vpop.f32.mrf.mxu0
        %925 = vmatprep.mubr.bf16.mxu0 0
        %926 = vmatmul.mubr.bf16.gmra.mxu0 %v877
        %v927 = vpop.f32.mrf.mxu0
        %v928 = vadd.f32 0.0, %v927
        %v929 = vpop.f32.mrf.mxu0
        %v930 = vpop.f32.mrf.mxu0
        %v931 = vadd.f32 0.0, %v930
        %v932 = vpop.f32.mrf.mxu0
        %933 = vmatprep.mubr.bf16.mxu0 0
        %934 = vmatmul.mubr.bf16.gmra.mxu0 %v880
        %v935 = vpop.f32.mrf.mxu0
        %v936 = vadd.f32 0.0, %v935
        %v937 = vpop.f32.mrf.mxu0
        %v938 = vpop.f32.mrf.mxu0
        %v939 = vadd.f32 0.0, %v938
        %v940 = vpop.f32.mrf.mxu0
        %941 = vmatprep.mubr.bf16.mxu0 0
        %942 = vmatmul.mubr.bf16.gmra.mxu0 %v883
        %v943 = vpop.f32.mrf.mxu0
        %v944 = vadd.f32 0.0, %v943
        %v945 = vpop.f32.mrf.mxu0
        %v946 = vpop.f32.mrf.mxu0
        %v947 = vadd.f32 0.0, %v946
        %v948 = vpop.f32.mrf.mxu0
        %949 = vdwg.mxu0
        %v950 = vrot.slane %v920, 4
        %v951 = vmax.f32 %v920, %v950
        %v952 = vrot.slane %v951, 2
        %v953 = vmax.f32 %v951, %v952
        %v954 = vrot.slane %v953, 1
        %v955 = vmax.f32 %v953, %v954
        %v956 = vrot.slane %v923, 4
        %v957 = vmax.f32 %v923, %v956
        %v958 = vrot.slane %v957, 2
        %v959 = vmax.f32 %v957, %v958
        %v960 = vrot.slane %v959, 1
        %v961 = vmax.f32 %v959, %v960
        %v962 = vrot.slane %v928, 4
        %v963 = vmax.f32 %v928, %v962
        %v964 = vrot.slane %v963, 2
        %v965 = vmax.f32 %v963, %v964
        %v966 = vrot.slane %v965, 1
        %v967 = vmax.f32 %v965, %v966
        %v968 = vrot.slane %v931, 4
        %v969 = vmax.f32 %v931, %v968
        %v970 = vrot.slane %v969, 2
        %v971 = vmax.f32 %v969, %v970
        %v972 = vrot.slane %v971, 1
        %v973 = vmax.f32 %v971, %v972
        %v974 = vrot.slane %v936, 4
        %v975 = vmax.f32 %v936, %v974
        %v976 = vrot.slane %v975, 2
        %v977 = vmax.f32 %v975, %v976
        %v978 = vrot.slane %v977, 1
        %v979 = vmax.f32 %v977, %v978
        %v980 = vrot.slane %v939, 4
        %v981 = vmax.f32 %v939, %v980
        %v982 = vrot.slane %v981, 2
        %v983 = vmax.f32 %v981, %v982
        %v984 = vrot.slane %v983, 1
        %v985 = vmax.f32 %v983, %v984
        %v986 = vrot.slane %v944, 4
        %v987 = vmax.f32 %v944, %v986
        %v988 = vrot.slane %v987, 2
        %v989 = vmax.f32 %v987, %v988
        %v990 = vrot.slane %v989, 1
        %v991 = vmax.f32 %v989, %v990
        %v992 = vrot.slane %v947, 4
        %v993 = vmax.f32 %v947, %v992
        %v994 = vrot.slane %v993, 2
        %v995 = vmax.f32 %v993, %v994
        %v996 = vrot.slane %v995, 1
        %v997 = vmax.f32 %v995, %v996
        %v998 = vadd.f32 %v955, 0.0
        %v999 = vadd.f32 %v961, 0.0
        %v1000 = vadd.f32 %v967, 0.0
        %v1001 = vadd.f32 %v973, 0.0
        %v1002 = vadd.f32 %v979, 0.0
        %v1003 = vadd.f32 %v985, 0.0
        %v1004 = vadd.f32 %v991, 0.0
        %v1005 = vadd.f32 %v997, 0.0
        %v1006 = vld [vmem:[#allocation8] sm:$0xf]
        %v1007 = vld [vmem:[#allocation8 + $0x4] sm:$0xf]
        %v1008 = vld [vmem:[#allocation8 + $0x8] sm:$0xf]
        %v1009 = vld [vmem:[#allocation8 + $0xc] sm:$0xf]
        %v1010 = vld [vmem:[#allocation8 + $0x10] sm:$0xf]
        %v1011 = vld [vmem:[#allocation8 + $0x14] sm:$0xf]
        %v1012 = vld [vmem:[#allocation8 + $0x18] sm:$0xf]
        %v1013 = vld [vmem:[#allocation8 + $0x1c] sm:$0xf]
        %v1014 = vld [vmem:[#allocation8 + $0x20] sm:$0xf]
        %v1015 = vld [vmem:[#allocation8 + $0x24] sm:$0xf]
        %v1016 = vld [vmem:[#allocation8 + $0x28] sm:$0xf]
        %v1017 = vld [vmem:[#allocation8 + $0x2c] sm:$0xf]
        %v1018 = vld [vmem:[#allocation8 + $0x30] sm:$0xf]
        %v1019 = vld [vmem:[#allocation8 + $0x34] sm:$0xf]
        %v1020 = vld [vmem:[#allocation8 + $0x38] sm:$0xf]
        %v1021 = vld [vmem:[#allocation8 + $0x3c] sm:$0xf]
        %v1022 = vld [vmem:[#allocation8 + $0x40] sm:$0xf]
        %v1023 = vld [vmem:[#allocation8 + $0x44] sm:$0xf]
        %v1024 = vld [vmem:[#allocation8 + $0x48] sm:$0xf]
        %v1025 = vld [vmem:[#allocation8 + $0x4c] sm:$0xf]
        %v1026 = vld [vmem:[#allocation2] sm:$0xf]
        %v1027 = vld [vmem:[#allocation2 + $0x8] sm:$0xf]
        %v1028 = vld [vmem:[#allocation2 + $0x10] sm:$0xf]
        %v1029 = vld [vmem:[#allocation2 + $0x18] sm:$0xf]
        %v1030 = vld [vmem:[#allocation2 + $0x20] sm:$0xf]
        %v1031 = vld [vmem:[#allocation2 + $0x28] sm:$0xf]
        %v1032 = vld [vmem:[#allocation2 + $0x30] sm:$0xf]
        %v1033 = vld [vmem:[#allocation2 + $0x38] sm:$0xf]
        %v1034 = vld [vmem:[#allocation2] sm:$0xc]
        %v1035 = vld [vmem:[#allocation2 + $0x8] sm:$0xc]
        %v1036 = vld [vmem:[#allocation2 + $0x10] sm:$0xc]
        %v1037 = vld [vmem:[#allocation2 + $0x18] sm:$0xc]
        %v1038 = vld [vmem:[#allocation2 + $0x20] sm:$0xc]
        %v1039 = vld [vmem:[#allocation2 + $0x28] sm:$0xc]
        %v1040 = vld [vmem:[#allocation2 + $0x30] sm:$0xc]
        %v1041 = vld [vmem:[#allocation2 + $0x38] sm:$0xc]
        %v1042 = vshrl.u32 %v475, 16
        %v1044 = vshll.u32 %v475, 16
        %v1046 = vrot.slane %v1044, 1
        %v1047 = vor.u32 %v1042, %v1046
        %v1048 = vshrl.u32 %v476, 16
        %v1050 = vshll.u32 %v476, 16
        %v1052 = vrot.slane %v1050, 1
        %v1053 = vor.u32 %v1048, %v1052
        %v1054 = vshrl.u32 %v477, 16
        %v1056 = vshll.u32 %v477, 16
        %v1058 = vrot.slane %v1056, 1
        %v1059 = vor.u32 %v1054, %v1058
        %v1060 = vshrl.u32 %v478, 16
        %v1062 = vshll.u32 %v478, 16
        %v1064 = vrot.slane %v1062, 1
        %v1065 = vor.u32 %v1060, %v1064
        %v1066 = vshrl.u32 %v479, 16
        %v1068 = vshll.u32 %v479, 16
        %v1070 = vrot.slane %v1068, 1
        %v1071 = vor.u32 %v1066, %v1070
        %v1072 = vshrl.u32 %v480, 16
        %v1074 = vshll.u32 %v480, 16
        %v1076 = vrot.slane %v1074, 1
        %v1077 = vor.u32 %v1072, %v1076
        %v1078 = vshrl.u32 %v481, 16
        %v1080 = vshll.u32 %v481, 16
        %v1082 = vrot.slane %v1080, 1
        %v1083 = vor.u32 %v1078, %v1082
        %v1084 = vshrl.u32 %v482, 16
        %v1086 = vshll.u32 %v482, 16
        %v1088 = vrot.slane %v1086, 1
        %v1089 = vor.u32 %v1084, %v1088
        %1090 = vrot.lane.b32.xlu0 %v1047, 32
        %v1091 = vpop.permute.xlu0 %1090
        %1092 = vrot.lane.b32.xlu0 %v1053, 32
        %v1093 = vpop.permute.xlu0 %1092
        %1094 = vrot.lane.b32.xlu0 %v1059, 32
        %v1095 = vpop.permute.xlu0 %1094
        %1096 = vrot.lane.b32.xlu0 %v1065, 32
        %v1097 = vpop.permute.xlu0 %1096
        %1098 = vrot.lane.b32.xlu0 %v1071, 32
        %v1099 = vpop.permute.xlu0 %1098
        %1100 = vrot.lane.b32.xlu0 %v1077, 32
        %v1101 = vpop.permute.xlu0 %1100
        %1102 = vrot.lane.b32.xlu0 %v1083, 32
        %v1103 = vpop.permute.xlu0 %1102
        %1104 = vrot.lane.b32.xlu0 %v1089, 32
        %v1105 = vpop.permute.xlu0 %1104
        %v1106 = vrot.slane %v499, 1
        %v1107 = vrot.slane %v500, 1
        %v1108 = vrot.slane %v501, 1
        %v1109 = vrot.slane %v502, 1
        %v1110 = vrot.slane %v503, 1
        %v1111 = vrot.slane %v504, 1
        %v1112 = vrot.slane %v505, 1
        %v1113 = vrot.slane %v506, 1
        %1114 = vrot.lane.b32.xlu0 %v1106, 64
        %v1115 = vpop.permute.xlu0 %1114
        %1116 = vrot.lane.b32.xlu0 %v1107, 64
        %v1117 = vpop.permute.xlu0 %1116
        %1118 = vrot.lane.b32.xlu0 %v1108, 64
        %v1119 = vpop.permute.xlu0 %1118
        %1120 = vrot.lane.b32.xlu0 %v1109, 64
        %v1121 = vpop.permute.xlu0 %1120
        %1122 = vrot.lane.b32.xlu0 %v1110, 64
        %v1123 = vpop.permute.xlu0 %1122
        %1124 = vrot.lane.b32.xlu0 %v1111, 64
        %v1125 = vpop.permute.xlu0 %1124
        %1126 = vrot.lane.b32.xlu0 %v1112, 64
        %v1127 = vpop.permute.xlu0 %1126
        %1128 = vrot.lane.b32.xlu0 %v1113, 64
        %v1129 = vpop.permute.xlu0 %1128
        %v1131 = vshrl.u32 %v595, 16
        %v1133 = vrot.slane %v1131, 1
        %v1134 = vshll.u32 %v595, 16
        %v1136 = vrot.slane %v1134, 2
        %v1137 = vor.u32 %v1133, %v1136
        %v1139 = vshrl.u32 %v596, 16
        %v1141 = vrot.slane %v1139, 1
        %v1142 = vshll.u32 %v596, 16
        %v1144 = vrot.slane %v1142, 2
        %v1145 = vor.u32 %v1141, %v1144
        %v1147 = vshrl.u32 %v597, 16
        %v1149 = vrot.slane %v1147, 1
        %v1150 = vshll.u32 %v597, 16
        %v1152 = vrot.slane %v1150, 2
        %v1153 = vor.u32 %v1149, %v1152
        %v1155 = vshrl.u32 %v598, 16
        %v1157 = vrot.slane %v1155, 1
        %v1158 = vshll.u32 %v598, 16
        %v1160 = vrot.slane %v1158, 2
        %v1161 = vor.u32 %v1157, %v1160
        %v1163 = vshrl.u32 %v599, 16
        %v1165 = vrot.slane %v1163, 1
        %v1166 = vshll.u32 %v599, 16
        %v1168 = vrot.slane %v1166, 2
        %v1169 = vor.u32 %v1165, %v1168
        %v1171 = vshrl.u32 %v600, 16
        %v1173 = vrot.slane %v1171, 1
        %v1174 = vshll.u32 %v600, 16
        %v1176 = vrot.slane %v1174, 2
        %v1177 = vor.u32 %v1173, %v1176
        %v1179 = vshrl.u32 %v601, 16
        %v1181 = vrot.slane %v1179, 1
        %v1182 = vshll.u32 %v601, 16
        %v1184 = vrot.slane %v1182, 2
        %v1185 = vor.u32 %v1181, %v1184
        %v1187 = vshrl.u32 %v602, 16
        %v1189 = vrot.slane %v1187, 1
        %v1190 = vshll.u32 %v602, 16
        %v1192 = vrot.slane %v1190, 2
        %v1193 = vor.u32 %v1189, %v1192
        %1194 = vrot.lane.b32.xlu0 %v1137, 96
        %v1195 = vpop.permute.xlu0 %1194
        %1196 = vrot.lane.b32.xlu0 %v1145, 96
        %v1197 = vpop.permute.xlu0 %1196
        %1198 = vrot.lane.b32.xlu0 %v1153, 96
        %v1199 = vpop.permute.xlu0 %1198
        %1200 = vrot.lane.b32.xlu0 %v1161, 96
        %v1201 = vpop.permute.xlu0 %1200
        %1202 = vrot.lane.b32.xlu0 %v1169, 96
        %v1203 = vpop.permute.xlu0 %1202
        %1204 = vrot.lane.b32.xlu0 %v1177, 96
        %v1205 = vpop.permute.xlu0 %1204
        %1206 = vrot.lane.b32.xlu0 %v1185, 96
        %v1207 = vpop.permute.xlu0 %1206
        %1208 = vrot.lane.b32.xlu0 %v1193, 96
        %v1209 = vpop.permute.xlu0 %1208
        %v1218 = vunpack.c.l.b16 %v1034
        %v1219 = vunpack.c.l.b16 %v1035
        %v1220 = vunpack.c.l.b16 %v1036
        %v1221 = vunpack.c.l.b16 %v1037
        %v1222 = vunpack.c.l.b16 %v1038
        %v1223 = vunpack.c.l.b16 %v1039
        %v1224 = vunpack.c.l.b16 %v1040
        %v1225 = vunpack.c.l.b16 %v1041
        %v1226 = vpack.c.b16 %v587, %v1218
        %v1227 = vpack.c.b16 %v588, %v1219
        %v1228 = vpack.c.b16 %v589, %v1220
        %v1229 = vpack.c.b16 %v590, %v1221
        %v1230 = vpack.c.b16 %v591, %v1222
        %v1231 = vpack.c.b16 %v592, %v1223
        %v1232 = vpack.c.b16 %v593, %v1224
        %v1233 = vpack.c.b16 %v594, %v1225
        %v1234 = vrot.slane %v1226, 2
        %v1235 = vrot.slane %v1227, 2
        %v1236 = vrot.slane %v1228, 2
        %v1237 = vrot.slane %v1229, 2
        %v1238 = vrot.slane %v1230, 2
        %v1239 = vrot.slane %v1231, 2
        %v1240 = vrot.slane %v1232, 2
        %v1241 = vrot.slane %v1233, 2
        %v1244 = vsel %vm627, %v1026, %v1091
        %v1247 = vsel %vm627, %v1027, %v1093
        %v1250 = vsel %vm627, %v1028, %v1095
        %v1253 = vsel %vm627, %v1029, %v1097
        %v1256 = vsel %vm627, %v1030, %v1099
        %v1259 = vsel %vm627, %v1031, %v1101
        %v1262 = vsel %vm627, %v1032, %v1103
        %v1265 = vsel %vm627, %v1033, %v1105
        %v1267 = vsel %vm652, %v1244, %v1115
        %v1269 = vsel %vm652, %v1247, %v1117
        %v1271 = vsel %vm652, %v1250, %v1119
        %v1273 = vsel %vm652, %v1253, %v1121
        %v1275 = vsel %vm652, %v1256, %v1123
        %v1277 = vsel %vm652, %v1259, %v1125
        %v1279 = vsel %vm652, %v1262, %v1127
        %v1281 = vsel %vm652, %v1265, %v1129
        %v1283 = vsel %vm872, %v1267, %v1195
        %v1285 = vsel %vm872, %v1269, %v1197
        %v1287 = vsel %vm872, %v1271, %v1199
        %v1289 = vsel %vm872, %v1273, %v1201
        %v1291 = vsel %vm872, %v1275, %v1203
        %v1293 = vsel %vm872, %v1277, %v1205
        %v1295 = vsel %vm872, %v1279, %v1207
        %v1297 = vsel %vm872, %v1281, %v1209
        %v1306 = vunpack.c.l.b16 %v1283
        %v1307 = vunpack.c.l.b16 %v1234
        %v1308 = vunpack.c.l.b16 %v1285
        %v1309 = vunpack.c.l.b16 %v1235
        %v1310 = vunpack.c.l.b16 %v1287
        %v1311 = vunpack.c.l.b16 %v1236
        %v1312 = vunpack.c.l.b16 %v1289
        %v1313 = vunpack.c.l.b16 %v1237
        %v1314 = vunpack.c.l.b16 %v1291
        %v1315 = vunpack.c.l.b16 %v1238
        %v1316 = vunpack.c.l.b16 %v1293
        %v1317 = vunpack.c.l.b16 %v1239
        %v1318 = vunpack.c.l.b16 %v1295
        %v1319 = vunpack.c.l.b16 %v1240
        %v1320 = vunpack.c.l.b16 %v1297
        %v1321 = vunpack.c.l.b16 %v1241
        %v1322 = vpack.c.b16 %v1308, %v1306
        %v1323 = vpack.c.b16 %v1309, %v1307
        %v1324 = vpack.c.b16 %v1312, %v1310
        %v1325 = vpack.c.b16 %v1313, %v1311
        %v1326 = vpack.c.b16 %v1316, %v1314
        %v1327 = vpack.c.b16 %v1317, %v1315
        %v1328 = vpack.c.b16 %v1320, %v1318
        %v1329 = vpack.c.b16 %v1321, %v1319
        %v1354 = vunpack.c.l.b16 %v1006
        %v1355 = vunpack.c.l.b16 %v1007
        %v1356 = vunpack.c.l.b16 %v1008
        %v1357 = vunpack.c.l.b16 %v1009
        %v1358 = vunpack.c.l.b16 %v1010
        %v1359 = vunpack.c.l.b16 %v1011
        %v1360 = vunpack.c.l.b16 %v1012
        %v1361 = vunpack.c.l.b16 %v1013
        %v1362 = vunpack.c.l.b16 %v1014
        %v1363 = vunpack.c.l.b16 %v1015
        %v1364 = vunpack.c.l.b16 %v1016
        %v1365 = vunpack.c.l.b16 %v1017
        %v1366 = vunpack.c.l.b16 %v1018
        %v1367 = vunpack.c.l.b16 %v1019
        %v1368 = vunpack.c.l.b16 %v1020
        %v1369 = vunpack.c.l.b16 %v1021
        %v1370 = vunpack.c.l.b16 %v1022
        %v1371 = vunpack.c.l.b16 %v1023
        %v1372 = vunpack.c.l.b16 %v1024
        %v1373 = vunpack.c.l.b16 %v1025
        %v1374 = vpack.c.b16 %v1355, %v1354
        %v1375 = vpack.c.b16 %v1357, %v1356
        %v1376 = vpack.c.b16 %v1359, %v1358
        %v1377 = vpack.c.b16 %v1361, %v1360
        %v1378 = vpack.c.b16 %v1363, %v1362
        %v1379 = vpack.c.b16 %v1365, %v1364
        %v1380 = vpack.c.b16 %v1367, %v1366
        %v1381 = vpack.c.b16 %v1369, %v1368
        %v1382 = vpack.c.b16 %v1371, %v1370
        %v1383 = vpack.c.b16 %v1373, %v1372
        %v1395 = vsel %vm627, %v1323, 0
        %v1398 = vsel %vm627, %v1325, 0
        %v1401 = vsel %vm627, %v1327, 0
        %v1404 = vsel %vm627, %v1329, 0
        %1406 = vmatprep.subr.bf16.mxu0 0
        %1407 = vmatpush1.bf16.msra.mxu0 %v1381
        %1408 = vmatprep.subr.bf16.mxu0 0
        %1409 = vmatpush1.bf16.msra.mxu0 %v1380
        %1410 = vmatprep.subr.bf16.mxu0 0
        %1411 = vmatpush1.bf16.msra.mxu0 %v1379
        %1412 = vmatprep.subr.bf16.mxu0 0
        %1413 = vmatpush1.bf16.msra.mxu0 %v1378
        %1414 = vmatprep.subr.bf16.mxu0 0
        %1415 = vmatpush1.bf16.msra.mxu0 %v1377
        %1416 = vmatprep.subr.bf16.mxu0 0
        %1417 = vmatpush1.bf16.msra.mxu0 %v1376
        %1418 = vmatprep.subr.bf16.mxu0 0
        %1419 = vmatpush1.bf16.msra.mxu0 %v1375
        %1420 = vmatprep.subr.bf16.mxu0 0
        %1421 = vmatpush1.bf16.msra.mxu0 %v1374
        %1422 = vmatprep.subr.bf16.mxu0 0
        %1423 = vmatpush2.bf16.msra.mxu0 0
        %1424 = vmatprep.subr.bf16.mxu0 0
        %1425 = vmatpush2.bf16.msra.mxu0 0
        %1426 = vmatprep.subr.bf16.mxu0 0
        %1427 = vmatpush2.bf16.msra.mxu0 0
        %1428 = vmatprep.subr.bf16.mxu0 0
        %1429 = vmatpush2.bf16.msra.mxu0 0
        %1430 = vmatprep.subr.bf16.mxu0 0
        %1431 = vmatpush2.bf16.msra.mxu0 0
        %1432 = vmatprep.subr.bf16.mxu0 0
        %1433 = vmatpush2.bf16.msra.mxu0 0
        %1434 = vmatprep.subr.bf16.mxu0 0
        %1435 = vmatpush2.bf16.msra.mxu0 %v1383
        %1436 = vmatprep.subr.bf16.mxu0 0
        %1437 = vmatpush2.bf16.msra.mxu0 %v1382
        %1438 = vmatprep.mubr.bf16.mxu0 %v1395
        %1439 = vmatmul.mubr.bf16.gmra.mxu0 %v1322
        %v1440 = vpop.f32.mrf.mxu0
        %v1441 = vadd.f32 0.0, %v1440
        %v1442 = vpop.f32.mrf.mxu0
        %v1443 = vpop.f32.mrf.mxu0
        %v1444 = vadd.f32 0.0, %v1443
        %v1445 = vpop.f32.mrf.mxu0
        %1446 = vmatprep.mubr.bf16.mxu0 %v1398
        %1447 = vmatmul.mubr.bf16.gmra.mxu0 %v1324
        %v1448 = vpop.f32.mrf.mxu0
        %v1449 = vadd.f32 0.0, %v1448
        %v1450 = vpop.f32.mrf.mxu0
        %v1451 = vpop.f32.mrf.mxu0
        %v1452 = vadd.f32 0.0, %v1451
        %v1453 = vpop.f32.mrf.mxu0
        %1454 = vmatprep.mubr.bf16.mxu0 %v1401
        %1455 = vmatmul.mubr.bf16.gmra.mxu0 %v1326
        %v1456 = vpop.f32.mrf.mxu0
        %v1457 = vadd.f32 0.0, %v1456
        %v1458 = vpop.f32.mrf.mxu0
        %v1459 = vpop.f32.mrf.mxu0
        %v1460 = vadd.f32 0.0, %v1459
        %v1461 = vpop.f32.mrf.mxu0
        %1462 = vmatprep.mubr.bf16.mxu0 %v1404
        %1463 = vmatmul.mubr.bf16.gmra.mxu0 %v1328
        %v1464 = vpop.f32.mrf.mxu0
        %v1465 = vadd.f32 0.0, %v1464
        %v1466 = vpop.f32.mrf.mxu0
        %v1467 = vpop.f32.mrf.mxu0
        %v1468 = vadd.f32 0.0, %v1467
        %v1469 = vpop.f32.mrf.mxu0
        %1470 = vdwg.mxu0
        %v1471 = vrot.slane %v1441, 4
        %v1472 = vmax.f32 %v1441, %v1471
        %v1473 = vrot.slane %v1472, 2
        %v1474 = vmax.f32 %v1472, %v1473
        %v1475 = vrot.slane %v1474, 1
        %v1476 = vmax.f32 %v1474, %v1475
        %v1477 = vrot.slane %v1444, 4
        %v1478 = vmax.f32 %v1444, %v1477
        %v1479 = vrot.slane %v1478, 2
        %v1480 = vmax.f32 %v1478, %v1479
        %v1481 = vrot.slane %v1480, 1
        %v1482 = vmax.f32 %v1480, %v1481
        %v1483 = vrot.slane %v1449, 4
        %v1484 = vmax.f32 %v1449, %v1483
        %v1485 = vrot.slane %v1484, 2
        %v1486 = vmax.f32 %v1484, %v1485
        %v1487 = vrot.slane %v1486, 1
        %v1488 = vmax.f32 %v1486, %v1487
        %v1489 = vrot.slane %v1452, 4
        %v1490 = vmax.f32 %v1452, %v1489
        %v1491 = vrot.slane %v1490, 2
        %v1492 = vmax.f32 %v1490, %v1491
        %v1493 = vrot.slane %v1492, 1
        %v1494 = vmax.f32 %v1492, %v1493
        %v1495 = vrot.slane %v1457, 4
        %v1496 = vmax.f32 %v1457, %v1495
        %v1497 = vrot.slane %v1496, 2
        %v1498 = vmax.f32 %v1496, %v1497
        %v1499 = vrot.slane %v1498, 1
        %v1500 = vmax.f32 %v1498, %v1499
        %v1501 = vrot.slane %v1460, 4
        %v1502 = vmax.f32 %v1460, %v1501
        %v1503 = vrot.slane %v1502, 2
        %v1504 = vmax.f32 %v1502, %v1503
        %v1505 = vrot.slane %v1504, 1
        %v1506 = vmax.f32 %v1504, %v1505
        %v1507 = vrot.slane %v1465, 4
        %v1508 = vmax.f32 %v1465, %v1507
        %v1509 = vrot.slane %v1508, 2
        %v1510 = vmax.f32 %v1508, %v1509
        %v1511 = vrot.slane %v1510, 1
        %v1512 = vmax.f32 %v1510, %v1511
        %v1513 = vrot.slane %v1468, 4
        %v1514 = vmax.f32 %v1468, %v1513
        %v1515 = vrot.slane %v1514, 2
        %v1516 = vmax.f32 %v1514, %v1515
        %v1517 = vrot.slane %v1516, 1
        %v1518 = vmax.f32 %v1516, %v1517
        %v1519 = vadd.f32 %v998, %v1476
        %v1520 = vadd.f32 %v999, %v1482
        %v1521 = vadd.f32 %v1000, %v1488
        %v1522 = vadd.f32 %v1001, %v1494
        %v1523 = vadd.f32 %v1002, %v1500
        %v1524 = vadd.f32 %v1003, %v1506
        %v1525 = vadd.f32 %v1004, %v1512
        %v1526 = vadd.f32 %v1005, %v1518
        %v1527 = vld [vmem:[%s3] sm:$0x1]
        %v1529 = vlaneseq
        %v1530 = vshrl.u32 %v1529, 7
        %v1531 = vsub.s32 0, %v1530
        %v1532 = vrot.slane %v1527, %v1531
        %v1534 = vadd.f32 %v1519, %v1532
        %v1535 = vadd.f32 %v1520, %v1532
        %v1536 = vadd.f32 %v1521, %v1532
        %v1537 = vadd.f32 %v1522, %v1532
        %v1538 = vadd.f32 %v1523, %v1532
        %v1539 = vadd.f32 %v1524, %v1532
        %v1540 = vadd.f32 %v1525, %v1532
        %v1541 = vadd.f32 %v1526, %v1532
        %v1542 = vmax.f32 %v1534, 0.0
        %v1543 = vmax.f32 %v1535, 0.0
        %v1544 = vmax.f32 %v1536, 0.0
        %v1545 = vmax.f32 %v1537, 0.0
        %v1546 = vmax.f32 %v1538, 0.0
        %v1547 = vmax.f32 %v1539, 0.0
        %v1548 = vmax.f32 %v1540, 0.0
        %v1549 = vmax.f32 %v1541, 0.0
        %v1550 = vld [vmem:[#allocation9] sm:$0xff]
        %v1551 = vld [vmem:[#allocation9 + $0x8] sm:$0xff]
        %v1552 = vld [vmem:[#allocation9 + $0x10] sm:$0xff]
        %v1553 = vld [vmem:[#allocation9 + $0x18] sm:$0xff]
        %v1554 = vld [vmem:[#allocation9 + $0x20] sm:$0xff]
        %v1555 = vld [vmem:[#allocation9 + $0x28] sm:$0xff]
        %v1556 = vld [vmem:[#allocation9 + $0x30] sm:$0xff]
        %v1557 = vld [vmem:[#allocation9 + $0x38] sm:$0xff]
        %v1558 = vld [vmem:[#allocation9 + $0x40] sm:$0xff]
        %v1559 = vld [vmem:[#allocation9 + $0x48] sm:$0xff]
        %v1560 = vld [vmem:[#allocation9 + $0x50] sm:$0xff]
        %v1561 = vld [vmem:[#allocation9 + $0x58] sm:$0xff]
        %v1562 = vld [vmem:[#allocation9 + $0x60] sm:$0xff]
        %v1563 = vld [vmem:[#allocation9 + $0x68] sm:$0xff]
        %v1564 = vld [vmem:[#allocation9 + $0x70] sm:$0xff]
        %v1565 = vld [vmem:[#allocation9 + $0x78] sm:$0xff]
        %v1566 = vld [vmem:[%s5] sm:$0x1]
        %v1568 = vlaneseq
        %v1569 = vshrl.u32 %v1568, 7
        %v1570 = vsub.s32 0, %v1569
        %v1571 = vrot.slane %v1566, %v1570
        %v1581 = vrot.slane %v1543, 7
        %vm1582 = vcmask 1041409
        %v1583 = vsel %vm1582, %v1581, %v1542
        %v1584 = vrot.slane %v1544, 6
        %vm1585 = vcmask 1042434
        %v1586 = vsel %vm1585, %v1584, %v1583
        %v1587 = vrot.slane %v1545, 5
        %vm1588 = vcmask 1043459
        %v1589 = vsel %vm1588, %v1587, %v1586
        %v1590 = vrot.slane %v1546, 4
        %vm1591 = vcmask 1044484
        %v1592 = vsel %vm1591, %v1590, %v1589
        %v1593 = vrot.slane %v1547, 3
        %vm1594 = vcmask 1045509
        %v1595 = vsel %vm1594, %v1593, %v1592
        %v1596 = vrot.slane %v1548, 2
        %vm1597 = vcmask 1046534
        %v1598 = vsel %vm1597, %v1596, %v1595
        %v1599 = vrot.slane %v1549, 1
        %vm1600 = vcmask 1047559
        %v1601 = vsel %vm1600, %v1599, %v1598
        %1603 = vmatprep.subr.mxu0 0.0
        %1604 = vmatpush1.msra.mxu0 %v1565
        %1605 = vmatprep.subr.mxu0 0.0
        %1606 = vmatpush1.msra.mxu0 %v1564
        %1607 = vmatprep.subr.mxu0 0.0
        %1608 = vmatpush1.msra.mxu0 %v1563
        %1609 = vmatprep.subr.mxu0 0.0
        %1610 = vmatpush1.msra.mxu0 %v1562
        %1611 = vmatprep.subr.mxu0 0.0
        %1612 = vmatpush1.msra.mxu0 %v1561
        %1613 = vmatprep.subr.mxu0 0.0
        %1614 = vmatpush1.msra.mxu0 %v1560
        %1615 = vmatprep.subr.mxu0 0.0
        %1616 = vmatpush1.msra.mxu0 %v1559
        %1617 = vmatprep.subr.mxu0 0.0
        %1618 = vmatpush1.msra.mxu0 %v1558
        %1619 = vmatprep.subr.mxu0 0.0
        %1620 = vmatpush1.msra.mxu0 %v1557
        %1621 = vmatprep.subr.mxu0 0.0
        %1622 = vmatpush1.msra.mxu0 %v1556
        %1623 = vmatprep.subr.mxu0 0.0
        %1624 = vmatpush1.msra.mxu0 %v1555
        %1625 = vmatprep.subr.mxu0 0.0
        %1626 = vmatpush1.msra.mxu0 %v1554
        %1627 = vmatprep.subr.mxu0 0.0
        %1628 = vmatpush1.msra.mxu0 %v1553
        %1629 = vmatprep.subr.mxu0 0.0
        %1630 = vmatpush1.msra.mxu0 %v1552
        %1631 = vmatprep.subr.mxu0 0.0
        %1632 = vmatpush1.msra.mxu0 %v1551
        %1633 = vmatprep.subr.mxu0 0.0
        %1634 = vmatpush1.msra.mxu0 %v1550
        %1635 = vmatprep.subr.mxu0 0.0
        %1636 = vmatpush2.msra.mxu0 0.0
        %1637 = vmatprep.subr.mxu0 0.0
        %1638 = vmatpush2.msra.mxu0 0.0
        %1639 = vmatprep.subr.mxu0 0.0
        %1640 = vmatpush2.msra.mxu0 0.0
        %1641 = vmatprep.subr.mxu0 0.0
        %1642 = vmatpush2.msra.mxu0 0.0
        %1643 = vmatprep.subr.mxu0 0.0
        %1644 = vmatpush2.msra.mxu0 0.0
        %1645 = vmatprep.subr.mxu0 0.0
        %1646 = vmatpush2.msra.mxu0 0.0
        %1647 = vmatprep.subr.mxu0 0.0
        %1648 = vmatpush2.msra.mxu0 0.0
        %1649 = vmatprep.subr.mxu0 0.0
        %1650 = vmatpush2.msra.mxu0 0.0
        %1651 = vmatprep.subr.mxu0 0.0
        %1652 = vmatpush2.msra.mxu0 0.0
        %1653 = vmatprep.subr.mxu0 0.0
        %1654 = vmatpush2.msra.mxu0 0.0
        %1655 = vmatprep.subr.mxu0 0.0
        %1656 = vmatpush2.msra.mxu0 0.0
        %1657 = vmatprep.subr.mxu0 0.0
        %1658 = vmatpush2.msra.mxu0 0.0
        %1659 = vmatprep.subr.mxu0 0.0
        %1660 = vmatpush2.msra.mxu0 0.0
        %1661 = vmatprep.subr.mxu0 0.0
        %1662 = vmatpush2.msra.mxu0 0.0
        %1663 = vmatprep.subr.mxu0 0.0
        %1664 = vmatpush2.msra.mxu0 0.0
        %1665 = vmatprep.subr.mxu0 0.0
        %1666 = vmatpush2.msra.mxu0 0.0
        %1667 = vmatprep.mubr.f32.mxu0 0.0
        %1668 = vmatmul.mubr.f32.gmra.mxu0 %v1601
        %v1669 = vpop.f32.mrf.mxu0
        %v1670 = vadd.f32 %v1571, %v1669
        %v1671 = vpop.f32.mrf.mxu0
        %1672 = vdwg.mxu0
        %v1673 = vlaneseq
        %v1674 = vand.u32 %v1673, 127
        %vm1675 = vcmp.lt.s32.totalorder %v1674, 4
        %v1676 = vsel %vm1675, %v1670, -1e+30
        %1677 = vmax.xlane.f32.xlu0 %v1676
        %v1678 = vpop.xlane.xlu0 %1677
        %v1679 = vsub.f32 %v1670, %v1678
        %v1680 = vsel %vm1675, %v1679, -1e+30
        %v1681 = vmul.f32 %v1680, 1.442695
        %v1682 = vpow.pop %v1681
        %1683 = vadd.xlane.f32.xlu0 %v1682
        %v1684 = vpop.xlane.xlu0 %1683
        %v1685 = vlog2.pop %v1684
        %v1686 = vmul.f32 %v1685, 0.6931472
        %v1687 = vsub.f32 %v1679, %v1686
        %1688 = vst [vmem:[%s313] sm:$0xff] %v1687
        %s1689 = sand.u32 %s164, 1
        %s1690 = scalar_lea.sflag [#allocation5], %s1689
        %s1691 = sand.u32 %s164, 1
        %s1692 = smul.addr %s1691, 8
        %s1693 = scalar_lea.vmem [#allocation11], %s1692
        // Predicated region
        $region61: #{tpu_custom_call.1} parent=43 // pred_check
          %p1694 = pneg %p174
        $region62: #{tpu_custom_call.1} parent=43 // pred_check_branch
          %1696 = sbr.rel (%p1694) target = $region64
        $region63: #{tpu_custom_call.1} parent=43 // pred_region
          %s1698 = ssub.s32 128, 128
          %1699 = vsyncadd %s1690, %s1698
          %s1700 = smul.addr %s25, 128
          %s1701 = scalar_lea.hbm %s6, %s1700
          %s1703 = sshll.u32 %s1693, 4
          %s1704 = int_to_ptr.vmem [resolvable:$true] %s1703
          %1706 = dma.vmem_to_hbm [thread:$0]  %s1704, 128, %s1701, %s1690
        $region64: #{tpu_custom_call.1} parent=43 // pred_fallthru
          _
      $region44: #{tpu_custom_call.1} parent=5 // pred_fallthru
        _
      %p1707 = scmp.le.s32.totalorder 2, %s20
      // Predicated region
      $region65: #{tpu_custom_call.1} parent=5 // pred_check
        %p1708 = pneg %p1707
      $region66: #{tpu_custom_call.1} parent=5 // pred_check_branch
        %1710 = sbr.rel (%p1708) target = $region68
      $region67: #{tpu_custom_call.1} parent=5 // pred_region
        %s1711 = ssub.s32 %s20, 2
        // Predicated region
        $region69: #{tpu_custom_call.1} parent=67 // pred_check
          %p1712 = pneg %p180
        $region70: #{tpu_custom_call.1} parent=67 // pred_check_branch
          %1714 = sbr.rel (%p1712) target = $region72
        $region71: #{tpu_custom_call.1} parent=67 // pred_region
          %s1715 = sand.u32 %s165, 1
          %s1716 = scalar_lea.sflag [#allocation5], %s1715
          %s1717 = sand.u32 %s165, 1
          %s1718 = smul.addr %s1717, 8
          %s1719 = scalar_lea.vmem [#allocation11], %s1718
          %1720 = dma.done %s1716, 128
        $region72: #{tpu_custom_call.1} parent=67 // pred_fallthru
          _
      $region68: #{tpu_custom_call.1} parent=5 // pred_fallthru
        _
    $region6: #{tpu_custom_call.1} parent=1 // loop_footer
      %s24 = sadd.s32 1, %s20
    $region7: #{tpu_custom_call.1} parent=1 // loop_footer_branch
      %19 = sbr.rel target = $region3
    $region8: #{tpu_custom_call.1} parent=1 // loop_exit
      _
    %1721 = vsyncpa [#allocation4], 1
    %s1722 = scalar_lea.sflag [#allocation4], 1
    %1723 = vsyncpa %s1722, 1
    %1724 = vsyncpa [#allocation7], 1
    %1725 = vsyncpa [#allocation10], 1
    %1726 = vsyncpa [#allocation5], 1
    %s1727 = scalar_lea.sflag [#allocation5], 1
    %1728 = vsyncpa %s1727, 1

</llo_original>
